<compile_context>
chip_gen: v7x
topology: tpu7x:2x2x1
jax: 0.10.0
libtpu: 0.0.40
codegen_flags: <defaults>
</compile_context>

<pallas_src>
import functools

import jax
import jax.numpy as jnp
import numpy as np
from jax.experimental import pallas as pl
from jax.experimental.pallas import tpu as pltpu

EPS = 1e-5


# ---------------------------------------------------------------------------
# Fused kernel: one grid step == one image, everything (C, flat-spatial) lane-dense.
# ---------------------------------------------------------------------------
def _fused_kernel(high_ref, low_ref, mask_ref, w0_ref, whi_ref, wlo_ref, wr_ref,
                  bcat_ref, a32_ref, br_ref, ar_ref, out_ref,
                  *, Wp, a0, MA, b0, MB, n):
    """
    high_ref : (1, C_in1, S)  bf16   zero-padded, flattened (Hp*Wp) high-res features
    low_ref  : (1, C_in2, S)  bf16   zero-padded, flattened low-res features
    mask_ref : (1, MA)        f32    1 on the HxW interior, 0 on the halo (cat range)
    w0_ref   : (C_out, C_in1)          bf16  conv0 1x1 (no BN / act)
    whi_ref  : (C_out, 9*C_out)        bf16  merged conv1/conv2 block-diagonal taps, BN folded
    wlo_ref  : (C_out, C_in2)          bf16  low 1x1, BN folded
    wr_ref   : (C_out, 9*2*C_out)      bf16  refine 3x3 taps, BN folded
    bcat_ref : (2*C_out, 1) f32   BN biases for the 32-ch concat (high ++ low)
    a32_ref  : (2*C_out, 1) f32   PReLU(32) slopes
    br_ref   : (C_out, 1)   f32   refine BN bias
    ar_ref   : (C_out, 1)   f32   refine PReLU slope (broadcast)
    out_ref  : (1, C_out, MB) f32  interior rows of the padded grid (cols trimmed in wrapper)

    Static ints (closure): Wp = padded width, a0/MA = cat compute range, b0/MB = output range.
    """
    f32 = jnp.float32
    bf16 = jnp.bfloat16

    # ---- conv0 : 1x1, C_in1 -> C_out, over the full padded grid ----------------------------
    # Input is zero outside the image interior and conv0 has no bias, so in0 keeps the exact
    # zero halo required by the dilated 3x3 convs below.
    x_hi = high_ref[0]                                                      # (C_in1, S) bf16
    in0 = jnp.dot(w0_ref[...], x_hi, preferred_element_type=f32)           # (C_out, S) f32

    # ---- conv1 (3x3, d=1) + conv2 (3x3, d=2) as ONE GEMM --------------------------------------
    # im2col rows = static lane-shift windows of the flat padded grid (dy*Wp + dx shifts).
    cols = []
    for dy in (-1, 0, 1):               # conv1: dilation 1, channels [:n]
        for dx in (-1, 0, 1):
            s = dy * Wp + dx
            cols.append(in0[:n, a0 + s:a0 + s + MA])
    for dy in (-2, 0, 2):               # conv2: dilation 2, channels [n:]
        for dx in (-2, 0, 2):
            s = dy * Wp + dx
            cols.append(in0[n:, a0 + s:a0 + s + MA])
    x_col = jnp.concatenate(cols, axis=0).astype(bf16)                     # (9*C_out, MA)
    hi = jnp.dot(whi_ref[...], x_col, preferred_element_type=f32)          # (C_out, MA)

    # ---- low path : 1x1 conv, C_in2 -> C_out (BN scale folded) --------------------------------
    x_lo = low_ref[0][:, a0:a0 + MA]                                        # (C_in2, MA) bf16
    lo = jnp.dot(wlo_ref[...], x_lo, preferred_element_type=f32)           # (C_out, MA)

    # ---- BN bias + per-channel PReLU(32) on the 32-channel concat, then re-impose the zero
    #      halo (bias/PReLU make the padding non-zero) with one precomputed interior mask. ------
    cat = jnp.concatenate([hi, lo], axis=0) + bcat_ref[...]                 # (2*C_out, MA) f32
    cat = jnp.where(cat >= 0.0, cat, a32_ref[...] * cat)
    cat = cat * mask_ref[...]                                               # zero outside interior

    # ---- refine : 3x3 conv 32 -> 16 as ONE GEMM + BN bias + PReLU -----------------------------
    r0 = b0 - a0                                                            # == Wp + 1
    rcols = []
    for dy in (-1, 0, 1):
        for dx in (-1, 0, 1):
            s = dy * Wp + dx
            rcols.append(cat[:, r0 + s:r0 + s + MB])
    x_r = jnp.concatenate(rcols, axis=0).astype(bf16)                       # (18*C_out, MB)
    y = jnp.dot(wr_ref[...], x_r, preferred_element_type=f32)              # (C_out, MB)
    y = y + br_ref[...]
    y = jnp.where(y >= 0.0, y, ar_ref[...] * y)
    out_ref[0] = y


# ---------------------------------------------------------------------------
# Parameter folding helpers (plain JAX, run once in the wrapper)
# ---------------------------------------------------------------------------
def _fold_bn(gamma, beta, mean, var, eps=EPS):
    s = gamma / jnp.sqrt(var + eps)
    return s, beta - mean * s


def _pack_taps(w, scale):
    # (Cout, Cin, 3, 3) * scale[Cout]  ->  (Cout, 9*Cin), column index t*Cin + cin, t = kh*3 + kw
    co, ci, _, _ = w.shape
    ws = w * scale[:, None, None, None]
    taps = jnp.transpose(ws, (2, 3, 0, 1)).reshape(9, co, ci)      # (t, cout, cin)
    return jnp.transpose(taps, (1, 0, 2)).reshape(co, 9 * ci)


# ---------------------------------------------------------------------------
# Parameters (deterministic; includes real BN running statistics)
# ---------------------------------------------------------------------------
def init_params(key, c_in1=32, c_in2=24, c_out=16):
    n = int(np.ceil(c_out / 2.0))
    n2 = c_out - n
    ks = jax.random.split(key, 17)

    def w(k, shape, s=0.1):
        return jax.random.normal(k, shape, jnp.float32) * s

    def pos(k, c, lo=0.5, hi=1.5):
        return jax.random.uniform(k, (c,), jnp.float32, lo, hi)

    return {
        "w_conv0": w(ks[0], (c_out, c_in1, 1, 1)),
        "w_conv1": w(ks[1], (n, n, 3, 3)),
        "w_conv2": w(ks[2], (n2, n2, 3, 3)),
        "bn_high_gamma": pos(ks[3], c_out), "bn_high_beta": w(ks[4], (c_out,)),
        "bn_high_mean": w(ks[5], (c_out,)), "bn_high_var": pos(ks[6], c_out),
        "w_low": w(ks[7], (c_out, c_in2, 1, 1)),
        "bn_low_gamma": pos(ks[8], c_out), "bn_low_beta": w(ks[9], (c_out,)),
        "bn_low_mean": w(ks[10], (c_out,)), "bn_low_var": pos(ks[11], c_out),
        "alpha_act": jnp.full((2 * c_out,), 0.25, jnp.float32),      # PReLU(32)
        "w_refine": w(ks[12], (c_out, 2 * c_out, 3, 3)),
        "bn_ref_gamma": pos(ks[13], c_out), "bn_ref_beta": w(ks[14], (c_out,)),
        "bn_ref_mean": w(ks[15], (c_out,)), "bn_ref_var": pos(ks[16], c_out),
        "alpha_ref": jnp.full((1,), 0.25, jnp.float32),              # PReLU()
    }


# ---------------------------------------------------------------------------
# Forward pass: one fused pallas_call, channel-first / flat-spatial layout
# ---------------------------------------------------------------------------
def conbine_feature_cat_forward(low_nchw, high_nchw, P):
    N, c_in1, H, W = high_nchw.shape
    c_in2 = low_nchw.shape[1]
    c_out = P["w_conv0"].shape[0]
    n = int(np.ceil(c_out / 2.0))

    # Padded flat spatial grid: 4 rows / 2 cols of zeros on each side.  Row padding 4 (>2) gives
    # every flat-shift window slice enough slack to stay in-bounds without any in-kernel masking
    # of the dilated convs; the 2-pixel halo itself serves d=1, d=2 and the refine conv.
    T, Cp = 4, 2
    Hp, Wp = H + 2 * T, W + 2 * Cp
    S = Hp * Wp
    a0 = 3 * Wp - 1                 # start of the cat / hi / lo compute range (flat index)
    MA = (H + 2) * Wp + 2           # its length (interior rows + 1-row ring + 1 px each side)
    b0 = 4 * Wp                     # start of the refine / output range (interior rows)
    MB = H * Wp

    def pad_flat(x):                # NCHW -> zero-padded, flattened (N, C, S), bf16
        xp = jnp.pad(x, ((0, 0), (0, 0), (T, T), (Cp, Cp)))
        return xp.reshape(x.shape[0], x.shape[1], S).astype(jnp.bfloat16)

    high = pad_flat(high_nchw)
    low = pad_flat(low_nchw)

    # Interior mask over the cat range (1 inside the HxW image, 0 on the halo).
    m2 = np.zeros((Hp, Wp), np.float32)
    m2[T:T + H, Cp:Cp + W] = 1.0
    mask = jnp.asarray(m2.reshape(1, S)[:, a0:a0 + MA])

    # BN folding (inference): y = gamma*(x-mean)/sqrt(var+eps) + beta.
    s_h, b_h = _fold_bn(P["bn_high_gamma"], P["bn_high_beta"], P["bn_high_mean"], P["bn_high_var"])
    s_l, b_l = _fold_bn(P["bn_low_gamma"], P["bn_low_beta"], P["bn_low_mean"], P["bn_low_var"])
    s_r, b_r = _fold_bn(P["bn_ref_gamma"], P["bn_ref_beta"], P["bn_ref_mean"], P["bn_ref_var"])

    bf16 = jnp.bfloat16
    w0 = P["w_conv0"][:, :, 0, 0].astype(bf16)                       # (c_out, c_in1)
    w1m = _pack_taps(P["w_conv1"], s_h[:n])                          # (n, 9n)
    w2m = _pack_taps(P["w_conv2"], s_h[n:])                          # (n2, 9n2)
    w_hi = jnp.zeros((c_out, 9 * c_out), jnp.float32)
    w_hi = w_hi.at[:n, :9 * n].set(w1m).at[n:, 9 * n:].set(w2m).astype(bf16)
    w_lo = (P["w_low"][:, :, 0, 0] * s_l[:, None]).astype(bf16)      # (c_out, c_in2)
    w_r = _pack_taps(P["w_refine"], s_r).astype(bf16)                # (c_out, 18*c_out)

    bcat = jnp.concatenate([b_h, b_l]).reshape(2 * c_out, 1).astype(jnp.float32)
    a32 = P["alpha_act"].reshape(2 * c_out, 1).astype(jnp.float32)
    br = b_r.reshape(c_out, 1).astype(jnp.float32)
    ar = jnp.full((c_out, 1), P["alpha_ref"][0], jnp.float32)

    kernel = functools.partial(_fused_kernel, Wp=Wp, a0=a0, MA=MA, b0=b0, MB=MB, n=n)

    out_flat = pl.pallas_call(
        kernel,
        out_shape=jax.ShapeDtypeStruct((N, c_out, MB), jnp.float32),
        grid_spec=pltpu.PrefetchScalarGridSpec(
            num_scalar_prefetch=0,
            grid=(N,),
            in_specs=[
                pl.BlockSpec((1, c_in1, S), lambda b: (b, 0, 0)),        # high (padded, flat)
                pl.BlockSpec((1, c_in2, S), lambda b: (b, 0, 0)),        # low  (padded, flat)
                pl.BlockSpec((1, MA), lambda b: (0, 0)),                 # interior mask
                pl.BlockSpec((c_out, c_in1), lambda b: (0, 0)),          # conv0
                pl.BlockSpec((c_out, 9 * c_out), lambda b: (0, 0)),      # merged conv1/conv2 taps
                pl.BlockSpec((c_out, c_in2), lambda b: (0, 0)),          # low 1x1
                pl.BlockSpec((c_out, 9 * 2 * c_out), lambda b: (0, 0)),  # refine taps
                pl.BlockSpec((2 * c_out, 1), lambda b: (0, 0)),          # BN bias (cat)
                pl.BlockSpec((2 * c_out, 1), lambda b: (0, 0)),          # PReLU(32) slopes
                pl.BlockSpec((c_out, 1), lambda b: (0, 0)),              # refine BN bias
                pl.BlockSpec((c_out, 1), lambda b: (0, 0)),              # refine PReLU slope
            ],
            out_specs=pl.BlockSpec((1, c_out, MB), lambda b: (b, 0, 0)),
        ),
        compiler_params=pltpu.CompilerParams(
            dimension_semantics=("parallel",),
            vmem_limit_bytes=32 * 1024 * 1024,
        ),
    )(high, low, mask, w0, w_hi, w_lo, w_r, bcat, a32, br, ar)

    # Drop the column halo and restore NCHW (pure metadata/slice work, outside the kernel).
    return out_flat.reshape(N, c_out, H, Wp)[:, :, :, Cp:Cp + W]


# ---------------------------------------------------------------------------
# Pure-JAX reference (lax conv) for a correctness check
# ---------------------------------------------------------------------------
def _conv_nchw(x, w, padding, dilation):
    return jax.lax.conv_general_dilated(
        x, w, (1, 1), ((padding, padding), (padding, padding)),
        rhs_dilation=(dilation, dilation),
        dimension_numbers=("NCHW", "OIHW", "NCHW"),
        precision=jax.lax.Precision.HIGHEST)


def _prelu(x, a):
    return jnp.where(x >= 0, x, a.reshape(1, -1, 1, 1) * x)


def _bn(x, gamma, beta, mean, var):
    s, b = _fold_bn(gamma, beta, mean, var)
    return x * s.reshape(1, -1, 1, 1) + b.reshape(1, -1, 1, 1)


def ref_forward(low, high, P):
    c_out = P["w_conv0"].shape[0]
    n = int(np.ceil(c_out / 2.0))
    in0 = _conv_nchw(high, P["w_conv0"], 0, 1)
    in1, in2 = in0[:, :n], in0[:, n:]
    hi = jnp.concatenate([_conv_nchw(in1, P["w_conv1"], 1, 1),
                          _conv_nchw(in2, P["w_conv2"], 2, 2)], axis=1)
    hi = _bn(hi, P["bn_high_gamma"], P["bn_high_beta"], P["bn_high_mean"], P["bn_high_var"])
    lo = _bn(_conv_nchw(low, P["w_low"], 0, 1),
             P["bn_low_gamma"], P["bn_low_beta"], P["bn_low_mean"], P["bn_low_var"])
    cat = jnp.concatenate([hi, lo], axis=1)
    act = _prelu(cat, P["alpha_act"])
    r = _bn(_conv_nchw(act, P["w_refine"], 1, 1),
            P["bn_ref_gamma"], P["bn_ref_beta"], P["bn_ref_mean"], P["bn_ref_var"])
    return _prelu(r, jnp.full((c_out,), P["alpha_ref"][0]))


if __name__ == "__main__":
    key = jax.random.PRNGKey(0)
    kp, kl, khigh = jax.random.split(key, 3)
    P = init_params(kp)

    N, H, W = 2, 16, 16
    low_fea = jax.random.normal(kl, (N, 24, H, W), jnp.float32)
    high_fea = jax.random.normal(khigh, (N, 32, H, W), jnp.float32)

    fwd = jax.jit(conbine_feature_cat_forward)
    out = jax.block_until_ready(fwd(low_fea, high_fea, P))
    assert out.shape == (N, 16, H, W)

    ref = jax.block_until_ready(ref_forward(low_fea, high_fea, P))
    # bf16 MXU operands (f32 accumulation) -> slightly loosened tolerance vs. the f32 reference.
    np.testing.assert_allclose(np.asarray(out), np.asarray(ref), rtol=2e-2, atol=3e-2)

    print("KERNEL_OK")
</pallas_src>

<mosaic_0001>
module attributes {stable_mosaic.version = 11 : i64} {
  func.func @_fused_kernel(%arg0: i32, %arg1: memref<1x32x480xbf16, #tpu.memory_space<vmem>>, %arg2: memref<1x24x480xbf16, #tpu.memory_space<vmem>>, %arg3: memref<1x362xf32, #tpu.memory_space<vmem>>, %arg4: memref<16x32xbf16, #tpu.memory_space<vmem>>, %arg5: memref<16x144xbf16, #tpu.memory_space<vmem>>, %arg6: memref<16x24xbf16, #tpu.memory_space<vmem>>, %arg7: memref<16x288xbf16, #tpu.memory_space<vmem>>, %arg8: memref<32x1xf32, #tpu.memory_space<vmem>>, %arg9: memref<32x1xf32, #tpu.memory_space<vmem>>, %arg10: memref<16x1xf32, #tpu.memory_space<vmem>>, %arg11: memref<16x1xf32, #tpu.memory_space<vmem>>, %arg12: memref<1x16x320xf32, #tpu.memory_space<vmem>>) attributes {dimension_semantics = [#tpu.dimension_semantics<parallel>], iteration_bounds = array<i64: 2>, scalar_prefetch = 0 : i64, scratch_operands = 0 : i64, tpu.core_type = #tpu.core_type<tc>, window_params = [{transform_indices = @transform_0, window_bounds = array<i64: 1, 32, 480>}, {transform_indices = @transform_1, window_bounds = array<i64: 1, 24, 480>}, {pipeline_mode = #tpu.pipeline_mode<synchronous>, transform_indices = @transform_2, window_bounds = array<i64: 1, 362>}, {pipeline_mode = #tpu.pipeline_mode<synchronous>, transform_indices = @transform_3, window_bounds = array<i64: 16, 32>}, {pipeline_mode = #tpu.pipeline_mode<synchronous>, transform_indices = @transform_4, window_bounds = array<i64: 16, 144>}, {pipeline_mode = #tpu.pipeline_mode<synchronous>, transform_indices = @transform_5, window_bounds = array<i64: 16, 24>}, {pipeline_mode = #tpu.pipeline_mode<synchronous>, transform_indices = @transform_6, window_bounds = array<i64: 16, 288>}, {pipeline_mode = #tpu.pipeline_mode<synchronous>, transform_indices = @transform_7, window_bounds = array<i64: 32, 1>}, {pipeline_mode = #tpu.pipeline_mode<synchronous>, transform_indices = @transform_8, window_bounds = array<i64: 32, 1>}, {pipeline_mode = #tpu.pipeline_mode<synchronous>, transform_indices = @transform_9, window_bounds = array<i64: 16, 1>}, {pipeline_mode = #tpu.pipeline_mode<synchronous>, transform_indices = @transform_10, window_bounds = array<i64: 16, 1>}, {transform_indices = @transform_11, window_bounds = array<i64: 1, 16, 320>}]} {
    %c0 = arith.constant 0 : index
    %c0_0 = arith.constant 0 : index
    %c0_1 = arith.constant 0 : index
    %0 = vector.load %arg1[%c0, %c0_0, %c0_1] : memref<1x32x480xbf16, #tpu.memory_space<vmem>>, vector<1x32x480xbf16>
    %1 = vector.shape_cast %0 : vector<1x32x480xbf16> to vector<32x480xbf16>
    %c0_2 = arith.constant 0 : index
    %c0_3 = arith.constant 0 : index
    %2 = vector.load %arg4[%c0_2, %c0_3] : memref<16x32xbf16, #tpu.memory_space<vmem>>, vector<16x32xbf16>
    %cst = arith.constant dense<0.000000e+00> : vector<16x480xf32>
    %3 = tpu.matmul %2, %1, %cst {dimension_numbers = #tpu.dot_dimension_numbers<[1], [0], [0], [1], [0, 0, 1, 1], [], []>} : vector<16x32xbf16>, vector<32x480xbf16>, vector<16x480xf32> -> vector<16x480xf32>
    %4 = vector.extract_strided_slice %3 {offsets = [0, 38], sizes = [8, 362], strides = [1, 1]} : vector<16x480xf32> to vector<8x362xf32>
    %5 = vector.extract_strided_slice %3 {offsets = [0, 39], sizes = [8, 362], strides = [1, 1]} : vector<16x480xf32> to vector<8x362xf32>
    %6 = vector.extract_strided_slice %3 {offsets = [0, 40], sizes = [8, 362], strides = [1, 1]} : vector<16x480xf32> to vector<8x362xf32>
    %7 = vector.extract_strided_slice %3 {offsets = [0, 58], sizes = [8, 362], strides = [1, 1]} : vector<16x480xf32> to vector<8x362xf32>
    %8 = vector.extract_strided_slice %3 {offsets = [0, 59], sizes = [8, 362], strides = [1, 1]} : vector<16x480xf32> to vector<8x362xf32>
    %9 = vector.extract_strided_slice %3 {offsets = [0, 60], sizes = [8, 362], strides = [1, 1]} : vector<16x480xf32> to vector<8x362xf32>
    %10 = vector.extract_strided_slice %3 {offsets = [0, 78], sizes = [8, 362], strides = [1, 1]} : vector<16x480xf32> to vector<8x362xf32>
    %11 = vector.extract_strided_slice %3 {offsets = [0, 79], sizes = [8, 362], strides = [1, 1]} : vector<16x480xf32> to vector<8x362xf32>
    %12 = vector.extract_strided_slice %3 {offsets = [0, 80], sizes = [8, 362], strides = [1, 1]} : vector<16x480xf32> to vector<8x362xf32>
    %13 = vector.extract_strided_slice %3 {offsets = [8, 17], sizes = [8, 362], strides = [1, 1]} : vector<16x480xf32> to vector<8x362xf32>
    %14 = vector.extract_strided_slice %3 {offsets = [8, 19], sizes = [8, 362], strides = [1, 1]} : vector<16x480xf32> to vector<8x362xf32>
    %15 = vector.extract_strided_slice %3 {offsets = [8, 21], sizes = [8, 362], strides = [1, 1]} : vector<16x480xf32> to vector<8x362xf32>
    %16 = vector.extract_strided_slice %3 {offsets = [8, 57], sizes = [8, 362], strides = [1, 1]} : vector<16x480xf32> to vector<8x362xf32>
    %17 = vector.extract_strided_slice %3 {offsets = [8, 59], sizes = [8, 362], strides = [1, 1]} : vector<16x480xf32> to vector<8x362xf32>
    %18 = vector.extract_strided_slice %3 {offsets = [8, 61], sizes = [8, 362], strides = [1, 1]} : vector<16x480xf32> to vector<8x362xf32>
    %19 = vector.extract_strided_slice %3 {offsets = [8, 97], sizes = [8, 362], strides = [1, 1]} : vector<16x480xf32> to vector<8x362xf32>
    %20 = vector.extract_strided_slice %3 {offsets = [8, 99], sizes = [8, 362], strides = [1, 1]} : vector<16x480xf32> to vector<8x362xf32>
    %21 = vector.extract_strided_slice %3 {offsets = [8, 101], sizes = [8, 362], strides = [1, 1]} : vector<16x480xf32> to vector<8x362xf32>
    %22 = tpu.concatenate %4, %5, %6, %7, %8, %9, %10, %11, %12, %13, %14, %15, %16, %17, %18, %19 in 0 : vector<8x362xf32>, vector<8x362xf32>, vector<8x362xf32>, vector<8x362xf32>, vector<8x362xf32>, vector<8x362xf32>, vector<8x362xf32>, vector<8x362xf32>, vector<8x362xf32>, vector<8x362xf32>, vector<8x362xf32>, vector<8x362xf32>, vector<8x362xf32>, vector<8x362xf32>, vector<8x362xf32>, vector<8x362xf32> -> vector<128x362xf32>
    %23 = tpu.concatenate %20, %21 in 0 : vector<8x362xf32>, vector<8x362xf32> -> vector<16x362xf32>
    %24 = tpu.concatenate %22, %23 in 0 : vector<128x362xf32>, vector<16x362xf32> -> vector<144x362xf32>
    %25 = arith.truncf %24 : vector<144x362xf32> to vector<144x362xbf16>
    %c0_4 = arith.constant 0 : index
    %c0_5 = arith.constant 0 : index
    %26 = vector.load %arg5[%c0_4, %c0_5] : memref<16x144xbf16, #tpu.memory_space<vmem>>, vector<16x144xbf16>
    %cst_6 = arith.constant dense<0.000000e+00> : vector<16x362xf32>
    %27 = tpu.matmul %26, %25, %cst_6 {dimension_numbers = #tpu.dot_dimension_numbers<[1], [0], [0], [1], [0, 0, 1, 1], [], []>} : vector<16x144xbf16>, vector<144x362xbf16>, vector<16x362xf32> -> vector<16x362xf32>
    %c0_7 = arith.constant 0 : index
    %c0_8 = arith.constant 0 : index
    %c0_9 = arith.constant 0 : index
    %28 = vector.load %arg2[%c0_7, %c0_8, %c0_9] : memref<1x24x480xbf16, #tpu.memory_space<vmem>>, vector<1x24x480xbf16>
    %29 = vector.shape_cast %28 : vector<1x24x480xbf16> to vector<24x480xbf16>
    %30 = vector.extract_strided_slice %29 {offsets = [0, 59], sizes = [24, 362], strides = [1, 1]} : vector<24x480xbf16> to vector<24x362xbf16>
    %c0_10 = arith.constant 0 : index
    %c0_11 = arith.constant 0 : index
    %31 = vector.load %arg6[%c0_10, %c0_11] : memref<16x24xbf16, #tpu.memory_space<vmem>>, vector<16x24xbf16>
    %cst_12 = arith.constant dense<0.000000e+00> : vector<16x362xf32>
    %32 = tpu.matmul %31, %30, %cst_12 {dimension_numbers = #tpu.dot_dimension_numbers<[1], [0], [0], [1], [0, 0, 1, 1], [], []>} : vector<16x24xbf16>, vector<24x362xbf16>, vector<16x362xf32> -> vector<16x362xf32>
    %33 = tpu.concatenate %27, %32 in 0 : vector<16x362xf32>, vector<16x362xf32> -> vector<32x362xf32>
    %c0_13 = arith.constant 0 : index
    %c0_14 = arith.constant 0 : index
    %34 = vector.load %arg8[%c0_13, %c0_14] : memref<32x1xf32, #tpu.memory_space<vmem>>, vector<32x1xf32>
    %35 = vector.broadcast %34 : vector<32x1xf32> to vector<32x362xf32>
    %36 = arith.addf %33, %35 : vector<32x362xf32>
    %cst_15 = arith.constant 0.000000e+00 : f32
    %37 = vector.broadcast %cst_15 : f32 to vector<32x362xf32>
    %38 = arith.cmpf oge, %36, %37 : vector<32x362xf32>
    %c0_16 = arith.constant 0 : index
    %c0_17 = arith.constant 0 : index
    %39 = vector.load %arg9[%c0_16, %c0_17] : memref<32x1xf32, #tpu.memory_space<vmem>>, vector<32x1xf32>
    %40 = vector.broadcast %39 : vector<32x1xf32> to vector<32x362xf32>
    %41 = arith.mulf %40, %36 : vector<32x362xf32>
    %42 = arith.select %38, %36, %41 : vector<32x362xi1>, vector<32x362xf32>
    %c0_18 = arith.constant 0 : index
    %c0_19 = arith.constant 0 : index
    %43 = vector.load %arg3[%c0_18, %c0_19] : memref<1x362xf32, #tpu.memory_space<vmem>>, vector<1x362xf32>
    %44 = vector.broadcast %43 : vector<1x362xf32> to vector<32x362xf32>
    %45 = arith.mulf %42, %44 : vector<32x362xf32>
    %46 = vector.extract_strided_slice %45 {offsets = [0, 0], sizes = [32, 320], strides = [1, 1]} : vector<32x362xf32> to vector<32x320xf32>
    %47 = vector.extract_strided_slice %45 {offsets = [0, 1], sizes = [32, 320], strides = [1, 1]} : vector<32x362xf32> to vector<32x320xf32>
    %48 = vector.extract_strided_slice %45 {offsets = [0, 2], sizes = [32, 320], strides = [1, 1]} : vector<32x362xf32> to vector<32x320xf32>
    %49 = vector.extract_strided_slice %45 {offsets = [0, 20], sizes = [32, 320], strides = [1, 1]} : vector<32x362xf32> to vector<32x320xf32>
    %50 = vector.extract_strided_slice %45 {offsets = [0, 21], sizes = [32, 320], strides = [1, 1]} : vector<32x362xf32> to vector<32x320xf32>
    %51 = vector.extract_strided_slice %45 {offsets = [0, 22], sizes = [32, 320], strides = [1, 1]} : vector<32x362xf32> to vector<32x320xf32>
    %52 = vector.extract_strided_slice %45 {offsets = [0, 40], sizes = [32, 320], strides = [1, 1]} : vector<32x362xf32> to vector<32x320xf32>
    %53 = vector.extract_strided_slice %45 {offsets = [0, 41], sizes = [32, 320], strides = [1, 1]} : vector<32x362xf32> to vector<32x320xf32>
    %54 = vector.extract_strided_slice %45 {offsets = [0, 42], sizes = [32, 320], strides = [1, 1]} : vector<32x362xf32> to vector<32x320xf32>
    %55 = tpu.concatenate %46, %47, %48, %49, %50, %51, %52, %53, %54 in 0 : vector<32x320xf32>, vector<32x320xf32>, vector<32x320xf32>, vector<32x320xf32>, vector<32x320xf32>, vector<32x320xf32>, vector<32x320xf32>, vector<32x320xf32>, vector<32x320xf32> -> vector<288x320xf32>
    %56 = arith.truncf %55 : vector<288x320xf32> to vector<288x320xbf16>
    %c0_20 = arith.constant 0 : index
    %c0_21 = arith.constant 0 : index
    %57 = vector.load %arg7[%c0_20, %c0_21] : memref<16x288xbf16, #tpu.memory_space<vmem>>, vector<16x288xbf16>
    %cst_22 = arith.constant dense<0.000000e+00> : vector<16x320xf32>
    %58 = tpu.matmul %57, %56, %cst_22 {dimension_numbers = #tpu.dot_dimension_numbers<[1], [0], [0], [1], [0, 0, 1, 1], [], []>} : vector<16x288xbf16>, vector<288x320xbf16>, vector<16x320xf32> -> vector<16x320xf32>
    %c0_23 = arith.constant 0 : index
    %c0_24 = arith.constant 0 : index
    %59 = vector.load %arg10[%c0_23, %c0_24] : memref<16x1xf32, #tpu.memory_space<vmem>>, vector<16x1xf32>
    %60 = vector.broadcast %59 : vector<16x1xf32> to vector<16x320xf32>
    %61 = arith.addf %58, %60 : vector<16x320xf32>
    %cst_25 = arith.constant 0.000000e+00 : f32
    %62 = vector.broadcast %cst_25 : f32 to vector<16x320xf32>
    %63 = arith.cmpf oge, %61, %62 : vector<16x320xf32>
    %c0_26 = arith.constant 0 : index
    %c0_27 = arith.constant 0 : index
    %64 = vector.load %arg11[%c0_26, %c0_27] : memref<16x1xf32, #tpu.memory_space<vmem>>, vector<16x1xf32>
    %65 = vector.broadcast %64 : vector<16x1xf32> to vector<16x320xf32>
    %66 = arith.mulf %65, %61 : vector<16x320xf32>
    %67 = arith.select %63, %61, %66 : vector<16x320xi1>, vector<16x320xf32>
    %c0_28 = arith.constant 0 : index
    %c0_29 = arith.constant 0 : index
    %c0_30 = arith.constant 0 : index
    %68 = vector.load %arg12[%c0_28, %c0_29, %c0_30] : memref<1x16x320xf32, #tpu.memory_space<vmem>>, vector<1x16x320xf32>
    %69 = vector.shape_cast %68 : vector<1x16x320xf32> to vector<16x320xf32>
    %70 = vector.shape_cast %67 : vector<16x320xf32> to vector<1x16x320xf32>
    tpu.vector_store %arg12[%c0_28, %c0_29, %c0_30], %70 {strides = array<i32>} : memref<1x16x320xf32, #tpu.memory_space<vmem>>, vector<1x16x320xf32>,
    return
  }
  func.func @transform_0(%arg0: i32) -> (i32, i32, i32) {
    %c0_i32 = arith.constant 0 : i32
    %c0_i32_0 = arith.constant 0 : i32
    %c0_i32_1 = arith.constant 0 : i32
    return %arg0, %c0_i32, %c0_i32_0 : i32, i32, i32
  }
  func.func @transform_1(%arg0: i32) -> (i32, i32, i32) {
    %c0_i32 = arith.constant 0 : i32
    %c0_i32_0 = arith.constant 0 : i32
    %c0_i32_1 = arith.constant 0 : i32
    return %arg0, %c0_i32, %c0_i32_0 : i32, i32, i32
  }
  func.func @transform_2(%arg0: i32) -> (i32, i32) {
    %c0_i32 = arith.constant 0 : i32
    %c0_i32_0 = arith.constant 0 : i32
    %c0_i32_1 = arith.constant 0 : i32
    return %c0_i32, %c0_i32_0 : i32, i32
  }
  func.func @transform_3(%arg0: i32) -> (i32, i32) {
    %c0_i32 = arith.constant 0 : i32
    %c0_i32_0 = arith.constant 0 : i32
    %c0_i32_1 = arith.constant 0 : i32
    return %c0_i32, %c0_i32_0 : i32, i32
  }
  func.func @transform_4(%arg0: i32) -> (i32, i32) {
    %c0_i32 = arith.constant 0 : i32
    %c0_i32_0 = arith.constant 0 : i32
    %c0_i32_1 = arith.constant 0 : i32
    return %c0_i32, %c0_i32_0 : i32, i32
  }
  func.func @transform_5(%arg0: i32) -> (i32, i32) {
    %c0_i32 = arith.constant 0 : i32
    %c0_i32_0 = arith.constant 0 : i32
    %c0_i32_1 = arith.constant 0 : i32
    return %c0_i32, %c0_i32_0 : i32, i32
  }
  func.func @transform_6(%arg0: i32) -> (i32, i32) {
    %c0_i32 = arith.constant 0 : i32
    %c0_i32_0 = arith.constant 0 : i32
    %c0_i32_1 = arith.constant 0 : i32
    return %c0_i32, %c0_i32_0 : i32, i32
  }
  func.func @transform_7(%arg0: i32) -> (i32, i32) {
    %c0_i32 = arith.constant 0 : i32
    %c0_i32_0 = arith.constant 0 : i32
    %c0_i32_1 = arith.constant 0 : i32
    return %c0_i32, %c0_i32_0 : i32, i32
  }
  func.func @transform_8(%arg0: i32) -> (i32, i32) {
    %c0_i32 = arith.constant 0 : i32
    %c0_i32_0 = arith.constant 0 : i32
    %c0_i32_1 = arith.constant 0 : i32
    return %c0_i32, %c0_i32_0 : i32, i32
  }
  func.func @transform_9(%arg0: i32) -> (i32, i32) {
    %c0_i32 = arith.constant 0 : i32
    %c0_i32_0 = arith.constant 0 : i32
    %c0_i32_1 = arith.constant 0 : i32
    return %c0_i32, %c0_i32_0 : i32, i32
  }
  func.func @transform_10(%arg0: i32) -> (i32, i32) {
    %c0_i32 = arith.constant 0 : i32
    %c0_i32_0 = arith.constant 0 : i32
    %c0_i32_1 = arith.constant 0 : i32
    return %c0_i32, %c0_i32_0 : i32, i32
  }
  func.func @transform_11(%arg0: i32) -> (i32, i32, i32) {
    %c0_i32 = arith.constant 0 : i32
    %c0_i32_0 = arith.constant 0 : i32
    %c0_i32_1 = arith.constant 0 : i32
    return %arg0, %c0_i32, %c0_i32_0 : i32, i32, i32
  }
}

</mosaic_0001>

<llo_original>
// kernel: conbine_feature_cat_forward.1
$region0: #{conbine_feature_cat_forward.1}
  #allocation0 [shape = 'u32[]', space=smem, size = 0x4, offset = 0x4, fixed_abs, tag = 'smem constant byte address 0x4 - core index']
  #allocation1 [shape = 'u32[144,128]{1,0:T(1,128)}', space=vmem, size = 0x12000, scoped, tag = 'internal scratch']
  %s0 = inlined_call_operand.vmem [shape: bf16[2,32,480], index: 0, kind: input, shape index: {}]
  %s1 = inlined_call_operand.vmem [shape: bf16[2,24,480], index: 1, kind: input, shape index: {}]
  %s2 = inlined_call_operand.vmem [shape: f32[1,362], index: 2, kind: input, shape index: {}]
  %s3 = inlined_call_operand.vmem [shape: bf16[16,32], index: 3, kind: input, shape index: {}]
  %s4 = inlined_call_operand.vmem [shape: bf16[16,144], index: 4, kind: input, shape index: {}]
  %s5 = inlined_call_operand.vmem [shape: bf16[16,24], index: 5, kind: input, shape index: {}]
  %s6 = inlined_call_operand.vmem [shape: bf16[16,288], index: 6, kind: input, shape index: {}]
  %s7 = inlined_call_operand.vmem [shape: f32[32,1], index: 7, kind: input, shape index: {}]
  %s8 = inlined_call_operand.vmem [shape: f32[32,1], index: 8, kind: input, shape index: {}]
  %s9 = inlined_call_operand.vmem [shape: f32[16,1], index: 9, kind: input, shape index: {}]
  %s10 = inlined_call_operand.vmem [shape: f32[16,1], index: 10, kind: input, shape index: {}]
  %s11 = inlined_call_operand.vmem [shape: f32[2,16,320], index: 11, kind: output, shape index: {}]
  %s12 = sld [smem:[#allocation0]]
  $region77: #{conbine_feature_cat_forward.1} parent=0
    _
  %s14 = ssub.s32 1, %s12
  %s15 = scalar_select 0, %s14, %s12
  loop: start=0, step=1, limit=4
  $region2: #{conbine_feature_cat_forward.1} parent=0 // loop_pre_header
    _
  $region3: #{conbine_feature_cat_forward.1} parent=0 // loop_header
    %s17 = sphi 0, %s21
    %p18 = scmp.ge.s32.totalorder %s17, 4
    %s27 = sphi 0, %s29
    %s30 = sphi 0, %s27
    %s31 = sphi 0, %s30
    %s47 = sphi 0, %s31
    %s53 = sphi 0, %s55
    %s56 = sphi 0, %s53
    %s57 = sphi 0, %s56
    %s73 = sphi 0, %s57
    %s77 = sphi 0, %s77
    %s79 = sphi 0, %s77
    %s80 = sphi 0, %s79
    %s94 = sphi 0, %s80
    %s98 = sphi 0, %s98
    %s100 = sphi 0, %s98
    %s101 = sphi 0, %s100
    %s115 = sphi 0, %s101
    %s119 = sphi 0, %s119
    %s121 = sphi 0, %s119
    %s122 = sphi 0, %s121
    %s136 = sphi 0, %s122
    %s140 = sphi 0, %s140
    %s142 = sphi 0, %s140
    %s143 = sphi 0, %s142
    %s157 = sphi 0, %s143
    %s161 = sphi 0, %s161
    %s163 = sphi 0, %s161
    %s164 = sphi 0, %s163
    %s178 = sphi 0, %s164
    %s182 = sphi 0, %s182
    %s184 = sphi 0, %s182
    %s185 = sphi 0, %s184
    %s199 = sphi 0, %s185
    %s203 = sphi 0, %s203
    %s205 = sphi 0, %s203
    %s206 = sphi 0, %s205
    %s220 = sphi 0, %s206
    %s224 = sphi 0, %s224
    %s226 = sphi 0, %s224
    %s227 = sphi 0, %s226
    %s241 = sphi 0, %s227
    %s245 = sphi 0, %s245
    %s247 = sphi 0, %s245
    %s248 = sphi 0, %s247
    %s262 = sphi 0, %s248
    %s268 = sphi 0, %s270
    %s271 = sphi 0, %s268
    %s272 = sphi 0, %s271
    %s288 = sphi 0, %s272
  $region4: #{conbine_feature_cat_forward.1} parent=0 // loop_header_branch
    %20 = sbr.rel (%p18) target = $region8
  $region5: #{conbine_feature_cat_forward.1} parent=0 // loop_body
    %s22 = ssub.s32 %s17, 1
    %s23 = ssub.s32 %s17, 2
    %s24 = sadd.s32 %s17, 1
    %s25 = ssub.s32 %s17, %s24
    %p26 = scmp.eq.s32.totalorder %s25, 0
    %s28 = sadd.s32 %s27, 1
    %s29 = scalar_select %p26, %s27, %s28
    %p32 = pneg %p26
    %p33 = scmp.eq.s32.totalorder %s17, 1
    %p34 = por %p32, %p33
    %p35 = scmp.ne.s32.totalorder %s27, %s30
    %p36 = scmp.eq.s32.totalorder %s17, 0
    %p37 = por %p35, %p36
    %p38 = scmp.ne.s32.totalorder %s27, %s30
    %p39 = scmp.eq.s32.totalorder %s22, 1
    %p40 = por %p38, %p39
    %p41 = scmp.ne.s32.totalorder %s30, %s31
    %p42 = scmp.eq.s32.totalorder %s22, 0
    %p43 = por %p41, %p42
    %p44 = scmp.ne.s32.totalorder %s30, %s31
    %p45 = scmp.eq.s32.totalorder %s23, 1
    %p46 = por %p44, %p45
    %p48 = scmp.ne.s32.totalorder %s31, %s47
    %p49 = scmp.eq.s32.totalorder %s23, 0
    %p50 = por %p48, %p49
    %s51 = ssub.s32 %s17, %s24
    %p52 = scmp.eq.s32.totalorder %s51, 0
    %s54 = sadd.s32 %s53, 1
    %s55 = scalar_select %p52, %s53, %s54
    %p58 = pneg %p52
    %p59 = scmp.eq.s32.totalorder %s17, 1
    %p60 = por %p58, %p59
    %p61 = scmp.ne.s32.totalorder %s53, %s56
    %p62 = scmp.eq.s32.totalorder %s17, 0
    %p63 = por %p61, %p62
    %p64 = scmp.ne.s32.totalorder %s53, %s56
    %p65 = scmp.eq.s32.totalorder %s22, 1
    %p66 = por %p64, %p65
    %p67 = scmp.ne.s32.totalorder %s56, %s57
    %p68 = scmp.eq.s32.totalorder %s22, 0
    %p69 = por %p67, %p68
    %p70 = scmp.ne.s32.totalorder %s56, %s57
    %p71 = scmp.eq.s32.totalorder %s23, 1
    %p72 = por %p70, %p71
    %p74 = scmp.ne.s32.totalorder %s57, %s73
    %p75 = scmp.eq.s32.totalorder %s23, 0
    %p76 = por %p74, %p75
    %s78 = sadd.s32 %s77, 1
    %p81 = scmp.eq.s32.totalorder %s17, 1
    %p82 = scmp.ne.s32.totalorder %s77, %s79
    %p83 = scmp.eq.s32.totalorder %s17, 0
    %p84 = por %p82, %p83
    %p85 = scmp.ne.s32.totalorder %s77, %s79
    %p86 = scmp.eq.s32.totalorder %s22, 1
    %p87 = por %p85, %p86
    %p88 = scmp.ne.s32.totalorder %s79, %s80
    %p89 = scmp.eq.s32.totalorder %s22, 0
    %p90 = por %p88, %p89
    %p91 = scmp.ne.s32.totalorder %s79, %s80
    %p92 = scmp.eq.s32.totalorder %s23, 1
    %p93 = por %p91, %p92
    %p95 = scmp.ne.s32.totalorder %s80, %s94
    %p96 = scmp.eq.s32.totalorder %s23, 0
    %p97 = por %p95, %p96
    %s99 = sadd.s32 %s98, 1
    %p102 = scmp.eq.s32.totalorder %s17, 1
    %p103 = scmp.ne.s32.totalorder %s98, %s100
    %p104 = scmp.eq.s32.totalorder %s17, 0
    %p105 = por %p103, %p104
    %p106 = scmp.ne.s32.totalorder %s98, %s100
    %p107 = scmp.eq.s32.totalorder %s22, 1
    %p108 = por %p106, %p107
    %p109 = scmp.ne.s32.totalorder %s100, %s101
    %p110 = scmp.eq.s32.totalorder %s22, 0
    %p111 = por %p109, %p110
    %p112 = scmp.ne.s32.totalorder %s100, %s101
    %p113 = scmp.eq.s32.totalorder %s23, 1
    %p114 = por %p112, %p113
    %p116 = scmp.ne.s32.totalorder %s101, %s115
    %p117 = scmp.eq.s32.totalorder %s23, 0
    %p118 = por %p116, %p117
    %s120 = sadd.s32 %s119, 1
    %p123 = scmp.eq.s32.totalorder %s17, 1
    %p124 = scmp.ne.s32.totalorder %s119, %s121
    %p125 = scmp.eq.s32.totalorder %s17, 0
    %p126 = por %p124, %p125
    %p127 = scmp.ne.s32.totalorder %s119, %s121
    %p128 = scmp.eq.s32.totalorder %s22, 1
    %p129 = por %p127, %p128
    %p130 = scmp.ne.s32.totalorder %s121, %s122
    %p131 = scmp.eq.s32.totalorder %s22, 0
    %p132 = por %p130, %p131
    %p133 = scmp.ne.s32.totalorder %s121, %s122
    %p134 = scmp.eq.s32.totalorder %s23, 1
    %p135 = por %p133, %p134
    %p137 = scmp.ne.s32.totalorder %s122, %s136
    %p138 = scmp.eq.s32.totalorder %s23, 0
    %p139 = por %p137, %p138
    %s141 = sadd.s32 %s140, 1
    %p144 = scmp.eq.s32.totalorder %s17, 1
    %p145 = scmp.ne.s32.totalorder %s140, %s142
    %p146 = scmp.eq.s32.totalorder %s17, 0
    %p147 = por %p145, %p146
    %p148 = scmp.ne.s32.totalorder %s140, %s142
    %p149 = scmp.eq.s32.totalorder %s22, 1
    %p150 = por %p148, %p149
    %p151 = scmp.ne.s32.totalorder %s142, %s143
    %p152 = scmp.eq.s32.totalorder %s22, 0
    %p153 = por %p151, %p152
    %p154 = scmp.ne.s32.totalorder %s142, %s143
    %p155 = scmp.eq.s32.totalorder %s23, 1
    %p156 = por %p154, %p155
    %p158 = scmp.ne.s32.totalorder %s143, %s157
    %p159 = scmp.eq.s32.totalorder %s23, 0
    %p160 = por %p158, %p159
    %s162 = sadd.s32 %s161, 1
    %p165 = scmp.eq.s32.totalorder %s17, 1
    %p166 = scmp.ne.s32.totalorder %s161, %s163
    %p167 = scmp.eq.s32.totalorder %s17, 0
    %p168 = por %p166, %p167
    %p169 = scmp.ne.s32.totalorder %s161, %s163
    %p170 = scmp.eq.s32.totalorder %s22, 1
    %p171 = por %p169, %p170
    %p172 = scmp.ne.s32.totalorder %s163, %s164
    %p173 = scmp.eq.s32.totalorder %s22, 0
    %p174 = por %p172, %p173
    %p175 = scmp.ne.s32.totalorder %s163, %s164
    %p176 = scmp.eq.s32.totalorder %s23, 1
    %p177 = por %p175, %p176
    %p179 = scmp.ne.s32.totalorder %s164, %s178
    %p180 = scmp.eq.s32.totalorder %s23, 0
    %p181 = por %p179, %p180
    %s183 = sadd.s32 %s182, 1
    %p186 = scmp.eq.s32.totalorder %s17, 1
    %p187 = scmp.ne.s32.totalorder %s182, %s184
    %p188 = scmp.eq.s32.totalorder %s17, 0
    %p189 = por %p187, %p188
    %p190 = scmp.ne.s32.totalorder %s182, %s184
    %p191 = scmp.eq.s32.totalorder %s22, 1
    %p192 = por %p190, %p191
    %p193 = scmp.ne.s32.totalorder %s184, %s185
    %p194 = scmp.eq.s32.totalorder %s22, 0
    %p195 = por %p193, %p194
    %p196 = scmp.ne.s32.totalorder %s184, %s185
    %p197 = scmp.eq.s32.totalorder %s23, 1
    %p198 = por %p196, %p197
    %p200 = scmp.ne.s32.totalorder %s185, %s199
    %p201 = scmp.eq.s32.totalorder %s23, 0
    %p202 = por %p200, %p201
    %s204 = sadd.s32 %s203, 1
    %p207 = scmp.eq.s32.totalorder %s17, 1
    %p208 = scmp.ne.s32.totalorder %s203, %s205
    %p209 = scmp.eq.s32.totalorder %s17, 0
    %p210 = por %p208, %p209
    %p211 = scmp.ne.s32.totalorder %s203, %s205
    %p212 = scmp.eq.s32.totalorder %s22, 1
    %p213 = por %p211, %p212
    %p214 = scmp.ne.s32.totalorder %s205, %s206
    %p215 = scmp.eq.s32.totalorder %s22, 0
    %p216 = por %p214, %p215
    %p217 = scmp.ne.s32.totalorder %s205, %s206
    %p218 = scmp.eq.s32.totalorder %s23, 1
    %p219 = por %p217, %p218
    %p221 = scmp.ne.s32.totalorder %s206, %s220
    %p222 = scmp.eq.s32.totalorder %s23, 0
    %p223 = por %p221, %p222
    %s225 = sadd.s32 %s224, 1
    %p228 = scmp.eq.s32.totalorder %s17, 1
    %p229 = scmp.ne.s32.totalorder %s224, %s226
    %p230 = scmp.eq.s32.totalorder %s17, 0
    %p231 = por %p229, %p230
    %p232 = scmp.ne.s32.totalorder %s224, %s226
    %p233 = scmp.eq.s32.totalorder %s22, 1
    %p234 = por %p232, %p233
    %p235 = scmp.ne.s32.totalorder %s226, %s227
    %p236 = scmp.eq.s32.totalorder %s22, 0
    %p237 = por %p235, %p236
    %p238 = scmp.ne.s32.totalorder %s226, %s227
    %p239 = scmp.eq.s32.totalorder %s23, 1
    %p240 = por %p238, %p239
    %p242 = scmp.ne.s32.totalorder %s227, %s241
    %p243 = scmp.eq.s32.totalorder %s23, 0
    %p244 = por %p242, %p243
    %s246 = sadd.s32 %s245, 1
    %p249 = scmp.eq.s32.totalorder %s17, 1
    %p250 = scmp.ne.s32.totalorder %s245, %s247
    %p251 = scmp.eq.s32.totalorder %s17, 0
    %p252 = por %p250, %p251
    %p253 = scmp.ne.s32.totalorder %s245, %s247
    %p254 = scmp.eq.s32.totalorder %s22, 1
    %p255 = por %p253, %p254
    %p256 = scmp.ne.s32.totalorder %s247, %s248
    %p257 = scmp.eq.s32.totalorder %s22, 0
    %p258 = por %p256, %p257
    %p259 = scmp.ne.s32.totalorder %s247, %s248
    %p260 = scmp.eq.s32.totalorder %s23, 1
    %p261 = por %p259, %p260
    %p263 = scmp.ne.s32.totalorder %s248, %s262
    %p264 = scmp.eq.s32.totalorder %s23, 0
    %p265 = por %p263, %p264
    %s266 = ssub.s32 %s17, %s24
    %p267 = scmp.eq.s32.totalorder %s266, 0
    %s269 = sadd.s32 %s268, 1
    %s270 = scalar_select %p267, %s268, %s269
    %p273 = pneg %p267
    %p274 = scmp.eq.s32.totalorder %s17, 1
    %p275 = por %p273, %p274
    %p276 = scmp.ne.s32.totalorder %s268, %s271
    %p277 = scmp.eq.s32.totalorder %s17, 0
    %p278 = por %p276, %p277
    %p279 = scmp.ne.s32.totalorder %s268, %s271
    %p280 = scmp.eq.s32.totalorder %s22, 1
    %p281 = por %p279, %p280
    %p282 = scmp.ne.s32.totalorder %s271, %s272
    %p283 = scmp.eq.s32.totalorder %s22, 0
    %p284 = por %p282, %p283
    %p285 = scmp.ne.s32.totalorder %s271, %s272
    %p286 = scmp.eq.s32.totalorder %s23, 1
    %p287 = por %p285, %p286
    %p289 = scmp.ne.s32.totalorder %s272, %s288
    %p290 = scmp.eq.s32.totalorder %s23, 0
    %p291 = por %p289, %p290
    %p292 = scmp.le.s32.totalorder 1, %s17
    %p293 = scmp.lt.s32.totalorder %s17, 3
    %p294 = pnand %p292, %p293
    %p295 = pneg %p294
    // Predicated region
    $region9: #{conbine_feature_cat_forward.1} parent=5 // pred_check
      _
    $region10: #{conbine_feature_cat_forward.1} parent=5 // pred_check_branch
      %297 = sbr.rel (%p294) target = $region12
    $region11: #{conbine_feature_cat_forward.1} parent=5 // pred_region
      %s298 = ssub.s32 %s17, 1
      // Predicated region
      $region13: #{conbine_feature_cat_forward.1} parent=11 // pred_check
        %p299 = pneg %p90
      $region14: #{conbine_feature_cat_forward.1} parent=11 // pred_check_branch
        %301 = sbr.rel (%p299) target = $region16
      $region15: #{conbine_feature_cat_forward.1} parent=11 // pred_region
        _
      $region16: #{conbine_feature_cat_forward.1} parent=11 // pred_fallthru
        _
      // Predicated region
      $region17: #{conbine_feature_cat_forward.1} parent=11 // pred_check
        %p302 = pneg %p111
      $region18: #{conbine_feature_cat_forward.1} parent=11 // pred_check_branch
        %304 = sbr.rel (%p302) target = $region20
      $region19: #{conbine_feature_cat_forward.1} parent=11 // pred_region
        _
      $region20: #{conbine_feature_cat_forward.1} parent=11 // pred_fallthru
        _
      // Predicated region
      $region21: #{conbine_feature_cat_forward.1} parent=11 // pred_check
        %p305 = pneg %p132
      $region22: #{conbine_feature_cat_forward.1} parent=11 // pred_check_branch
        %307 = sbr.rel (%p305) target = $region24
      $region23: #{conbine_feature_cat_forward.1} parent=11 // pred_region
        _
      $region24: #{conbine_feature_cat_forward.1} parent=11 // pred_fallthru
        _
      // Predicated region
      $region25: #{conbine_feature_cat_forward.1} parent=11 // pred_check
        %p308 = pneg %p153
      $region26: #{conbine_feature_cat_forward.1} parent=11 // pred_check_branch
        %310 = sbr.rel (%p308) target = $region28
      $region27: #{conbine_feature_cat_forward.1} parent=11 // pred_region
        _
      $region28: #{conbine_feature_cat_forward.1} parent=11 // pred_fallthru
        _
      // Predicated region
      $region29: #{conbine_feature_cat_forward.1} parent=11 // pred_check
        %p311 = pneg %p174
      $region30: #{conbine_feature_cat_forward.1} parent=11 // pred_check_branch
        %313 = sbr.rel (%p311) target = $region32
      $region31: #{conbine_feature_cat_forward.1} parent=11 // pred_region
        _
      $region32: #{conbine_feature_cat_forward.1} parent=11 // pred_fallthru
        _
      // Predicated region
      $region33: #{conbine_feature_cat_forward.1} parent=11 // pred_check
        %p314 = pneg %p195
      $region34: #{conbine_feature_cat_forward.1} parent=11 // pred_check_branch
        %316 = sbr.rel (%p314) target = $region36
      $region35: #{conbine_feature_cat_forward.1} parent=11 // pred_region
        _
      $region36: #{conbine_feature_cat_forward.1} parent=11 // pred_fallthru
        _
      // Predicated region
      $region37: #{conbine_feature_cat_forward.1} parent=11 // pred_check
        %p317 = pneg %p216
      $region38: #{conbine_feature_cat_forward.1} parent=11 // pred_check_branch
        %319 = sbr.rel (%p317) target = $region40
      $region39: #{conbine_feature_cat_forward.1} parent=11 // pred_region
        _
      $region40: #{conbine_feature_cat_forward.1} parent=11 // pred_fallthru
        _
      // Predicated region
      $region41: #{conbine_feature_cat_forward.1} parent=11 // pred_check
        %p320 = pneg %p237
      $region42: #{conbine_feature_cat_forward.1} parent=11 // pred_check_branch
        %322 = sbr.rel (%p320) target = $region44
      $region43: #{conbine_feature_cat_forward.1} parent=11 // pred_region
        _
      $region44: #{conbine_feature_cat_forward.1} parent=11 // pred_fallthru
        _
      // Predicated region
      $region45: #{conbine_feature_cat_forward.1} parent=11 // pred_check
        %p323 = pneg %p258
      $region46: #{conbine_feature_cat_forward.1} parent=11 // pred_check_branch
        %325 = sbr.rel (%p323) target = $region48
      $region47: #{conbine_feature_cat_forward.1} parent=11 // pred_region
        _
      $region48: #{conbine_feature_cat_forward.1} parent=11 // pred_fallthru
        _
    $region12: #{conbine_feature_cat_forward.1} parent=5 // pred_fallthru
      _
    %p326 = scmp.lt.s32.totalorder %s17, 2
    // Predicated region
    $region49: #{conbine_feature_cat_forward.1} parent=5 // pred_check
      %p327 = pneg %p326
    $region50: #{conbine_feature_cat_forward.1} parent=5 // pred_check_branch
      %329 = sbr.rel (%p327) target = $region52
    $region51: #{conbine_feature_cat_forward.1} parent=5 // pred_region
      // Predicated region
      $region53: #{conbine_feature_cat_forward.1} parent=51 // pred_check
        %p330 = pneg %p37
      $region54: #{conbine_feature_cat_forward.1} parent=51 // pred_check_branch
        %332 = sbr.rel (%p330) target = $region56
      $region55: #{conbine_feature_cat_forward.1} parent=51 // pred_region
        %p333 = scmp.lt.s32.totalorder %s17, 1
        %s334 = scalar_select %p333, %s17, 1
        %s335 = smul.addr %s334, 16
        %s336 = smul.addr %s335, 4
        %s337 = scalar_lea.vmem %s0, %s336
      $region56: #{conbine_feature_cat_forward.1} parent=51 // pred_fallthru
        _
      // Predicated region
      $region57: #{conbine_feature_cat_forward.1} parent=51 // pred_check
        %p338 = pneg %p63
      $region58: #{conbine_feature_cat_forward.1} parent=51 // pred_check_branch
        %340 = sbr.rel (%p338) target = $region60
      $region59: #{conbine_feature_cat_forward.1} parent=51 // pred_region
        %p341 = scmp.lt.s32.totalorder %s17, 1
        %s342 = scalar_select %p341, %s17, 1
        %s343 = smul.addr %s342, 12
        %s344 = smul.addr %s343, 4
        %s345 = scalar_lea.vmem %s1, %s344
      $region60: #{conbine_feature_cat_forward.1} parent=51 // pred_fallthru
        _
    $region52: #{conbine_feature_cat_forward.1} parent=5 // pred_fallthru
      _
    %p346 = scmp.le.s32.totalorder 1, %s17
    %p347 = scmp.lt.s32.totalorder %s17, 3
    %p348 = pnand %p346, %p347
    %p349 = pneg %p348
    // Predicated region
    $region61: #{conbine_feature_cat_forward.1} parent=5 // pred_check
      _
    $region62: #{conbine_feature_cat_forward.1} parent=5 // pred_check_branch
      %351 = sbr.rel (%p348) target = $region64
    $region63: #{conbine_feature_cat_forward.1} parent=5 // pred_region
      %s352 = ssub.s32 %s17, 1
      %p353 = scmp.lt.s32.totalorder %s22, 1
      %s354 = scalar_select %p353, %s22, 1
      %s355 = smul.addr %s354, 16
      %s356 = smul.addr %s355, 4
      %s357 = scalar_lea.vmem %s0, %s356
      %p358 = pneg %p43
      %p359 = pneg %p40
      %p360 = scmp.lt.s32.totalorder %s22, 1
      %s361 = scalar_select %p360, %s22, 1
      %s362 = smul.addr %s361, 12
      %s363 = smul.addr %s362, 4
      %s364 = scalar_lea.vmem %s1, %s363
      %p365 = pneg %p69
      %p366 = pneg %p66
      %p367 = pneg %p90
      %p368 = pneg %p87
      %p369 = pneg %p111
      %p370 = pneg %p108
      %p371 = pneg %p132
      %p372 = pneg %p129
      %p373 = pneg %p153
      %p374 = pneg %p150
      %p375 = pneg %p174
      %p376 = pneg %p171
      %p377 = pneg %p195
      %p378 = pneg %p192
      %p379 = pneg %p216
      %p380 = pneg %p213
      %p381 = pneg %p237
      %p382 = pneg %p234
      %p383 = pneg %p258
      %p384 = pneg %p255
      %p385 = pneg %p284
      %p386 = pneg %p281
      %p387 = scmp.lt.s32.totalorder %s22, 1
      %s388 = scalar_select %p387, %s22, 1
      %s389 = smul.addr %s388, 6
      %s390 = smul.addr %s389, 8
      %s391 = scalar_lea.vmem %s11, %s390
      %p392 = scmp.lt.s32.totalorder %s22, 1
      %s393 = scalar_select %p392, %s22, 1
      %s394 = smul.addr %s393, 16
      %s395 = smul.addr %s394, 4
      %s396 = scalar_lea.vmem %s0, %s395
      %p397 = scmp.lt.s32.totalorder %s22, 1
      %s398 = scalar_select %p397, %s22, 1
      %s399 = smul.addr %s398, 12
      %s400 = smul.addr %s399, 4
      %s401 = scalar_lea.vmem %s1, %s400
      %p402 = scmp.lt.s32.totalorder %s22, 1
      %s403 = scalar_select %p402, %s22, 1
      %s404 = smul.addr %s403, 6
      %s405 = smul.addr %s404, 8
      %s406 = scalar_lea.vmem %s11, %s405
      %v408 = vld [vmem:[%s396] sm:$0xff]
      %v409 = vld [vmem:[%s396 + $0x8] sm:$0xff]
      %v410 = vld [vmem:[%s396 + $0x10] sm:$0xff]
      %v411 = vld [vmem:[%s396 + $0x18] sm:$0xff]
      %v412 = vld [vmem:[%s396 + $0x20] sm:$0xff]
      %v413 = vld [vmem:[%s396 + $0x28] sm:$0xff]
      %v414 = vld [vmem:[%s396 + $0x30] sm:$0xff]
      %v415 = vld [vmem:[%s396 + $0x38] sm:$0xff]
      %v416 = vld [vmem:[%s3] sm:$0xf]
      %v417 = vld [vmem:[%s3 + $0x4] sm:$0xf]
      %v420 = vunpack.c.l.b16 %v416
      %v421 = vunpack.c.l.b16 %v417
      %v422 = vpack.c.b16 %v421, %v420
      %v431 = vunpack.c.l.b16 %v408
      %v432 = vunpack.c.h.b16 %v408
      %v433 = vunpack.c.l.b16 %v409
      %v434 = vunpack.c.h.b16 %v409
      %v435 = vunpack.c.l.b16 %v410
      %v436 = vunpack.c.h.b16 %v410
      %v437 = vunpack.c.l.b16 %v411
      %v438 = vunpack.c.h.b16 %v411
      %v439 = vunpack.c.l.b16 %v412
      %v440 = vunpack.c.h.b16 %v412
      %v441 = vunpack.c.l.b16 %v413
      %v442 = vunpack.c.h.b16 %v413
      %v443 = vunpack.c.l.b16 %v414
      %v444 = vunpack.c.h.b16 %v414
      %v445 = vunpack.c.l.b16 %v415
      %v446 = vunpack.c.h.b16 %v415
      %v447 = vpack.c.b16 %v435, %v431
      %v448 = vpack.c.b16 %v436, %v432
      %v449 = vpack.c.b16 %v437, %v433
      %v450 = vpack.c.b16 %v438, %v434
      %v451 = vpack.c.b16 %v443, %v439
      %v452 = vpack.c.b16 %v444, %v440
      %v453 = vpack.c.b16 %v445, %v441
      %v454 = vpack.c.b16 %v446, %v442
      %vm463 = vcmask 261120
      %v465 = vsel %vm463, %v422, 0
      %467 = vmatprep.subr.bf16.mxu0 %v448
      %468 = vmatpush1.bf16.msra.mxu0 %v447
      %469 = vmatprep.subr.bf16.mxu0 %v452
      %470 = vmatpush1.bf16.msra.mxu0 %v451
      %471 = vmatprep.subr.bf16.mxu0 0
      %472 = vmatpush1.bf16.msra.mxu0 0
      %473 = vmatprep.subr.bf16.mxu0 0
      %474 = vmatpush1.bf16.msra.mxu0 0
      %475 = vmatprep.subr.bf16.mxu0 0
      %476 = vmatpush1.bf16.msra.mxu0 0
      %477 = vmatprep.subr.bf16.mxu0 0
      %478 = vmatpush1.bf16.msra.mxu0 0
      %479 = vmatprep.subr.bf16.mxu0 0
      %480 = vmatpush1.bf16.msra.mxu0 0
      %481 = vmatprep.subr.bf16.mxu0 0
      %482 = vmatpush1.bf16.msra.mxu0 0
      %483 = vmatprep.subr.bf16.mxu0 0
      %484 = vmatpush1.bf16.msra.mxu0 0
      %485 = vmatprep.subr.bf16.mxu0 0
      %486 = vmatpush1.bf16.msra.mxu0 0
      %487 = vmatprep.subr.bf16.mxu0 0
      %488 = vmatpush1.bf16.msra.mxu0 0
      %489 = vmatprep.subr.bf16.mxu0 0
      %490 = vmatpush1.bf16.msra.mxu0 0
      %491 = vmatprep.subr.bf16.mxu0 0
      %492 = vmatpush1.bf16.msra.mxu0 0
      %493 = vmatprep.subr.bf16.mxu0 0
      %494 = vmatpush1.bf16.msra.mxu0 0
      %495 = vmatprep.subr.bf16.mxu0 0
      %496 = vmatpush1.bf16.msra.mxu0 0
      %497 = vmatprep.subr.bf16.mxu0 0
      %498 = vmatpush1.bf16.msra.mxu0 0
      %499 = vmatprep.mubr.bf16.mxu0 0
      %500 = vmatmul.mubr.bf16.gmra.mrb[0].mxu0 %v465
      %v501 = vpop.f32.mrb[0].mxu0
      %v502 = vadd.f32 0.0, %v501
      %v503 = vpop.f32.mrb[0].mxu0
      %v504 = vadd.f32 0.0, %v503
      %v505 = vpop.f32.mrb[0].mxu0
      %v506 = vadd.f32 0.0, %v505
      %v507 = vpop.f32.mrb[0].mxu0
      %v508 = vadd.f32 0.0, %v507
      %509 = vdwg.mxu0
      %510 = vmatprep.subr.bf16.mxu0 %v450
      %511 = vmatpush1.bf16.msra.mxu0 %v449
      %512 = vmatprep.subr.bf16.mxu0 %v454
      %513 = vmatpush1.bf16.msra.mxu0 %v453
      %514 = vmatprep.subr.bf16.mxu0 0
      %515 = vmatpush1.bf16.msra.mxu0 0
      %516 = vmatprep.subr.bf16.mxu0 0
      %517 = vmatpush1.bf16.msra.mxu0 0
      %518 = vmatprep.subr.bf16.mxu0 0
      %519 = vmatpush1.bf16.msra.mxu0 0
      %520 = vmatprep.subr.bf16.mxu0 0
      %521 = vmatpush1.bf16.msra.mxu0 0
      %522 = vmatprep.subr.bf16.mxu0 0
      %523 = vmatpush1.bf16.msra.mxu0 0
      %524 = vmatprep.subr.bf16.mxu0 0
      %525 = vmatpush1.bf16.msra.mxu0 0
      %526 = vmatprep.subr.bf16.mxu0 0
      %527 = vmatpush1.bf16.msra.mxu0 0
      %528 = vmatprep.subr.bf16.mxu0 0
      %529 = vmatpush1.bf16.msra.mxu0 0
      %530 = vmatprep.subr.bf16.mxu0 0
      %531 = vmatpush1.bf16.msra.mxu0 0
      %532 = vmatprep.subr.bf16.mxu0 0
      %533 = vmatpush1.bf16.msra.mxu0 0
      %534 = vmatprep.subr.bf16.mxu0 0
      %535 = vmatpush1.bf16.msra.mxu0 0
      %536 = vmatprep.subr.bf16.mxu0 0
      %537 = vmatpush1.bf16.msra.mxu0 0
      %538 = vmatprep.subr.bf16.mxu0 0
      %539 = vmatpush1.bf16.msra.mxu0 0
      %540 = vmatprep.subr.bf16.mxu0 0
      %541 = vmatpush1.bf16.msra.mxu0 0
      %542 = vmatprep.mubr.bf16.mxu0 0
      %543 = vmatmul.mubr.bf16.gmra.mrb[0].mxu0 %v465
      %v544 = vpop.f32.mrb[0].mxu0
      %v545 = vadd.f32 0.0, %v544
      %v546 = vpop.f32.mrb[0].mxu0
      %v547 = vadd.f32 0.0, %v546
      %v548 = vpop.f32.mrb[0].mxu0
      %v549 = vadd.f32 0.0, %v548
      %v550 = vpop.f32.mrb[0].mxu0
      %v551 = vadd.f32 0.0, %v550
      %552 = vdwg.mxu0
      %557 = vrot.lane.b32.xlu0 %v502, 127
      %v558 = vpop.permute.xlu0 %557
      %559 = vrot.lane.b32.xlu0 %v504, 127
      %v560 = vpop.permute.xlu0 %559
      %561 = vrot.lane.b32.xlu0 %v545, 127
      %v562 = vpop.permute.xlu0 %561
      %563 = vrot.lane.b32.xlu0 %v547, 127
      %v564 = vpop.permute.xlu0 %563
      %vm565 = vcmask 1039360
      %v566 = vsel %vm565, %v558, %v560
      %v567 = vsel %vm565, %v560, %v562
      %v568 = vsel %vm565, %v562, %v564
      %573 = vrot.lane.b32.xlu0 %v502, 126
      %v574 = vpop.permute.xlu0 %573
      %575 = vrot.lane.b32.xlu0 %v504, 126
      %v576 = vpop.permute.xlu0 %575
      %577 = vrot.lane.b32.xlu0 %v545, 126
      %v578 = vpop.permute.xlu0 %577
      %579 = vrot.lane.b32.xlu0 %v547, 126
      %v580 = vpop.permute.xlu0 %579
      %vm581 = vcmask 1031168
      %v582 = vsel %vm581, %v574, %v576
      %v583 = vsel %vm581, %v576, %v578
      %v584 = vsel %vm581, %v578, %v580
      %589 = vrot.lane.b32.xlu0 %v502, 108
      %v590 = vpop.permute.xlu0 %589
      %591 = vrot.lane.b32.xlu0 %v504, 108
      %v592 = vpop.permute.xlu0 %591
      %593 = vrot.lane.b32.xlu0 %v545, 108
      %v594 = vpop.permute.xlu0 %593
      %595 = vrot.lane.b32.xlu0 %v547, 108
      %v596 = vpop.permute.xlu0 %595
      %vm597 = vcmask 883712
      %v598 = vsel %vm597, %v590, %v592
      %v599 = vsel %vm597, %v592, %v594
      %v600 = vsel %vm597, %v594, %v596
      %605 = vrot.lane.b32.xlu0 %v502, 107
      %v606 = vpop.permute.xlu0 %605
      %607 = vrot.lane.b32.xlu0 %v504, 107
      %v608 = vpop.permute.xlu0 %607
      %609 = vrot.lane.b32.xlu0 %v545, 107
      %v610 = vpop.permute.xlu0 %609
      %611 = vrot.lane.b32.xlu0 %v547, 107
      %v612 = vpop.permute.xlu0 %611
      %vm613 = vcmask 875520
      %v614 = vsel %vm613, %v606, %v608
      %v615 = vsel %vm613, %v608, %v610
      %v616 = vsel %vm613, %v610, %v612
      %621 = vrot.lane.b32.xlu0 %v502, 106
      %v622 = vpop.permute.xlu0 %621
      %623 = vrot.lane.b32.xlu0 %v504, 106
      %v624 = vpop.permute.xlu0 %623
      %625 = vrot.lane.b32.xlu0 %v545, 106
      %v626 = vpop.permute.xlu0 %625
      %627 = vrot.lane.b32.xlu0 %v547, 106
      %v628 = vpop.permute.xlu0 %627
      %vm629 = vcmask 867328
      %v630 = vsel %vm629, %v622, %v624
      %v631 = vsel %vm629, %v624, %v626
      %v632 = vsel %vm629, %v626, %v628
      %637 = vrot.lane.b32.xlu0 %v502, 88
      %v638 = vpop.permute.xlu0 %637
      %639 = vrot.lane.b32.xlu0 %v504, 88
      %v640 = vpop.permute.xlu0 %639
      %641 = vrot.lane.b32.xlu0 %v545, 88
      %v642 = vpop.permute.xlu0 %641
      %643 = vrot.lane.b32.xlu0 %v547, 88
      %v644 = vpop.permute.xlu0 %643
      %vm645 = vcmask 719872
      %v646 = vsel %vm645, %v638, %v640
      %v647 = vsel %vm645, %v640, %v642
      %v648 = vsel %vm645, %v642, %v644
      %653 = vrot.lane.b32.xlu0 %v502, 87
      %v654 = vpop.permute.xlu0 %653
      %655 = vrot.lane.b32.xlu0 %v504, 87
      %v656 = vpop.permute.xlu0 %655
      %657 = vrot.lane.b32.xlu0 %v545, 87
      %v658 = vpop.permute.xlu0 %657
      %659 = vrot.lane.b32.xlu0 %v547, 87
      %v660 = vpop.permute.xlu0 %659
      %vm661 = vcmask 711680
      %v662 = vsel %vm661, %v654, %v656
      %v663 = vsel %vm661, %v656, %v658
      %v664 = vsel %vm661, %v658, %v660
      %669 = vrot.lane.b32.xlu0 %v502, 86
      %v670 = vpop.permute.xlu0 %669
      %671 = vrot.lane.b32.xlu0 %v504, 86
      %v672 = vpop.permute.xlu0 %671
      %673 = vrot.lane.b32.xlu0 %v545, 86
      %v674 = vpop.permute.xlu0 %673
      %675 = vrot.lane.b32.xlu0 %v547, 86
      %v676 = vpop.permute.xlu0 %675
      %vm677 = vcmask 703488
      %v678 = vsel %vm677, %v670, %v672
      %v679 = vsel %vm677, %v672, %v674
      %v680 = vsel %vm677, %v674, %v676
      %688 = vrot.lane.b32.xlu0 %v506, 21
      %v689 = vpop.permute.xlu0 %688
      %690 = vrot.lane.b32.xlu0 %v508, 21
      %v691 = vpop.permute.xlu0 %690
      %692 = vrot.lane.b32.xlu0 %v549, 21
      %v693 = vpop.permute.xlu0 %692
      %vm694 = vcmask 171008
      %v695 = vsel %vm694, %v689, %v691
      %v696 = vsel %vm694, %v691, %v693
      %701 = vrot.lane.b32.xlu0 %v506, 19
      %v702 = vpop.permute.xlu0 %701
      %703 = vrot.lane.b32.xlu0 %v508, 19
      %v704 = vpop.permute.xlu0 %703
      %705 = vrot.lane.b32.xlu0 %v549, 19
      %v706 = vpop.permute.xlu0 %705
      %vm707 = vcmask 154624
      %v708 = vsel %vm707, %v702, %v704
      %v709 = vsel %vm707, %v704, %v706
      %714 = vrot.lane.b32.xlu0 %v506, 17
      %v715 = vpop.permute.xlu0 %714
      %716 = vrot.lane.b32.xlu0 %v508, 17
      %v717 = vpop.permute.xlu0 %716
      %718 = vrot.lane.b32.xlu0 %v549, 17
      %v719 = vpop.permute.xlu0 %718
      %vm720 = vcmask 138240
      %v721 = vsel %vm720, %v715, %v717
      %v722 = vsel %vm720, %v717, %v719
      %728 = vrot.lane.b32.xlu0 %v506, 109
      %v729 = vpop.permute.xlu0 %728
      %730 = vrot.lane.b32.xlu0 %v508, 109
      %v731 = vpop.permute.xlu0 %730
      %732 = vrot.lane.b32.xlu0 %v549, 109
      %v733 = vpop.permute.xlu0 %732
      %734 = vrot.lane.b32.xlu0 %v551, 109
      %v735 = vpop.permute.xlu0 %734
      %vm736 = vcmask 891904
      %v737 = vsel %vm736, %v729, %v731
      %v738 = vsel %vm736, %v731, %v733
      %v739 = vsel %vm736, %v733, %v735
      %744 = vrot.lane.b32.xlu0 %v506, 107
      %v745 = vpop.permute.xlu0 %744
      %746 = vrot.lane.b32.xlu0 %v508, 107
      %v747 = vpop.permute.xlu0 %746
      %748 = vrot.lane.b32.xlu0 %v549, 107
      %v749 = vpop.permute.xlu0 %748
      %750 = vrot.lane.b32.xlu0 %v551, 107
      %v751 = vpop.permute.xlu0 %750
      %v752 = vsel %vm613, %v745, %v747
      %v753 = vsel %vm613, %v747, %v749
      %v754 = vsel %vm613, %v749, %v751
      %759 = vrot.lane.b32.xlu0 %v506, 105
      %v760 = vpop.permute.xlu0 %759
      %761 = vrot.lane.b32.xlu0 %v508, 105
      %v762 = vpop.permute.xlu0 %761
      %763 = vrot.lane.b32.xlu0 %v549, 105
      %v764 = vpop.permute.xlu0 %763
      %765 = vrot.lane.b32.xlu0 %v551, 105
      %v766 = vpop.permute.xlu0 %765
      %vm767 = vcmask 859136
      %v768 = vsel %vm767, %v760, %v762
      %v769 = vsel %vm767, %v762, %v764
      %v770 = vsel %vm767, %v764, %v766
      %775 = vrot.lane.b32.xlu0 %v506, 69
      %v776 = vpop.permute.xlu0 %775
      %777 = vrot.lane.b32.xlu0 %v508, 69
      %v778 = vpop.permute.xlu0 %777
      %779 = vrot.lane.b32.xlu0 %v549, 69
      %v780 = vpop.permute.xlu0 %779
      %781 = vrot.lane.b32.xlu0 %v551, 69
      %v782 = vpop.permute.xlu0 %781
      %vm783 = vcmask 564224
      %v784 = vsel %vm783, %v776, %v778
      %v785 = vsel %vm783, %v778, %v780
      %v786 = vsel %vm783, %v780, %v782
      %791 = vrot.lane.b32.xlu0 %v506, 126
      %v792 = vpop.permute.xlu0 %791
      %793 = vrot.lane.b32.xlu0 %v508, 126
      %v794 = vpop.permute.xlu0 %793
      %795 = vrot.lane.b32.xlu0 %v549, 126
      %v796 = vpop.permute.xlu0 %795
      %797 = vrot.lane.b32.xlu0 %v551, 126
      %v798 = vpop.permute.xlu0 %797
      %v799 = vsel %vm581, %v792, %v794
      %v800 = vsel %vm581, %v794, %v796
      %v801 = vsel %vm581, %v796, %v798
      %802 = vrot.lane.b32.xlu0 %v506, 67
      %v803 = vpop.permute.xlu0 %802
      %804 = vrot.lane.b32.xlu0 %v508, 67
      %v805 = vpop.permute.xlu0 %804
      %806 = vrot.lane.b32.xlu0 %v549, 67
      %v807 = vpop.permute.xlu0 %806
      %808 = vrot.lane.b32.xlu0 %v551, 67
      %v809 = vpop.permute.xlu0 %808
      %810 = vrot.lane.b32.xlu0 %v799, 67
      %v811 = vpop.permute.xlu0 %810
      %812 = vrot.lane.b32.xlu0 %v800, 67
      %v813 = vpop.permute.xlu0 %812
      %814 = vrot.lane.b32.xlu0 %v801, 67
      %v815 = vpop.permute.xlu0 %814
      %816 = vrot.lane.b32.xlu0 %v798, 67
      %v817 = vpop.permute.xlu0 %816
      %vm818 = vcmask 547840
      %v819 = vsel %vm818, %v803, %v805
      %v820 = vsel %vm818, %v805, %v807
      %v821 = vsel %vm818, %v807, %v809
      %v822 = vsel %vm818, %v811, %v813
      %v823 = vsel %vm818, %v813, %v815
      %v824 = vsel %vm818, %v815, %v817
      %v833 = vpack.c.bf16 %v566, %v502
      %v834 = vpack.c.bf16 %v567, %v504
      %v835 = vpack.c.bf16 %v568, %v545
      %v836 = vpack.c.bf16 %v564, %v547
      %v837 = vpack.c.bf16 %v598, %v582
      %v838 = vpack.c.bf16 %v599, %v583
      %v839 = vpack.c.bf16 %v600, %v584
      %v840 = vpack.c.bf16 %v596, %v580
      %v841 = vpack.c.bf16 %v630, %v614
      %v842 = vpack.c.bf16 %v631, %v615
      %v843 = vpack.c.bf16 %v632, %v616
      %v844 = vpack.c.bf16 %v628, %v612
      %v845 = vpack.c.bf16 %v662, %v646
      %v846 = vpack.c.bf16 %v663, %v647
      %v847 = vpack.c.bf16 %v664, %v648
      %v848 = vpack.c.bf16 %v660, %v644
      %v849 = vpack.c.bf16 %v689, %v678
      %v850 = vpack.c.bf16 %v695, %v679
      %v851 = vpack.c.bf16 %v696, %v680
      %v852 = vpack.c.bf16 %v693, %v676
      %v853 = vpack.c.bf16 %v715, %v702
      %v854 = vpack.c.bf16 %v721, %v708
      %v855 = vpack.c.bf16 %v722, %v709
      %v856 = vpack.c.bf16 %v719, %v706
      %v857 = vpack.c.bf16 %v752, %v737
      %v858 = vpack.c.bf16 %v753, %v738
      %v859 = vpack.c.bf16 %v754, %v739
      %v860 = vpack.c.bf16 %v751, %v735
      %v861 = vpack.c.bf16 %v784, %v768
      %v862 = vpack.c.bf16 %v785, %v769
      %v863 = vpack.c.bf16 %v786, %v770
      %v864 = vpack.c.bf16 %v782, %v766
      %v865 = vpack.c.bf16 %v822, %v819
      %v866 = vpack.c.bf16 %v823, %v820
      %v867 = vpack.c.bf16 %v824, %v821
      %v868 = vpack.c.bf16 %v817, %v809
      %v869 = vld [vmem:[%s4] sm:$0xff]
      %v870 = vld [vmem:[%s4 + $0x8] sm:$0xff]
      %v873 = vunpack.c.l.b16 %v869
      %v874 = vunpack.c.h.b16 %v869
      %v875 = vunpack.c.l.b16 %v870
      %v876 = vunpack.c.h.b16 %v870
      %v877 = vpack.c.b16 %v875, %v873
      %v878 = vpack.c.b16 %v876, %v874
      %916 = vrot.lane.b32.xlu0 %v833, 90
      %v917 = vpop.permute.xlu0 %916
      %918 = vrot.lane.b32.xlu0 %v834, 90
      %v919 = vpop.permute.xlu0 %918
      %920 = vrot.lane.b32.xlu0 %v835, 90
      %v921 = vpop.permute.xlu0 %920
      %922 = vrot.lane.b32.xlu0 %v836, 90
      %v923 = vpop.permute.xlu0 %922
      %924 = vrot.lane.b32.xlu0 %v837, 90
      %v925 = vpop.permute.xlu0 %924
      %926 = vrot.lane.b32.xlu0 %v838, 90
      %v927 = vpop.permute.xlu0 %926
      %928 = vrot.lane.b32.xlu0 %v839, 90
      %v929 = vpop.permute.xlu0 %928
      %930 = vrot.lane.b32.xlu0 %v840, 90
      %v931 = vpop.permute.xlu0 %930
      %932 = vrot.lane.b32.xlu0 %v841, 90
      %v933 = vpop.permute.xlu0 %932
      %934 = vrot.lane.b32.xlu0 %v842, 90
      %v935 = vpop.permute.xlu0 %934
      %936 = vrot.lane.b32.xlu0 %v843, 90
      %v937 = vpop.permute.xlu0 %936
      %938 = vrot.lane.b32.xlu0 %v844, 90
      %v939 = vpop.permute.xlu0 %938
      %940 = vrot.lane.b32.xlu0 %v845, 90
      %v941 = vpop.permute.xlu0 %940
      %942 = vrot.lane.b32.xlu0 %v846, 90
      %v943 = vpop.permute.xlu0 %942
      %944 = vrot.lane.b32.xlu0 %v847, 90
      %v945 = vpop.permute.xlu0 %944
      %946 = vrot.lane.b32.xlu0 %v848, 90
      %v947 = vpop.permute.xlu0 %946
      %948 = vrot.lane.b32.xlu0 %v849, 90
      %v949 = vpop.permute.xlu0 %948
      %950 = vrot.lane.b32.xlu0 %v850, 90
      %v951 = vpop.permute.xlu0 %950
      %952 = vrot.lane.b32.xlu0 %v851, 90
      %v953 = vpop.permute.xlu0 %952
      %954 = vrot.lane.b32.xlu0 %v852, 90
      %v955 = vpop.permute.xlu0 %954
      %956 = vrot.lane.b32.xlu0 %v853, 90
      %v957 = vpop.permute.xlu0 %956
      %958 = vrot.lane.b32.xlu0 %v854, 90
      %v959 = vpop.permute.xlu0 %958
      %960 = vrot.lane.b32.xlu0 %v855, 90
      %v961 = vpop.permute.xlu0 %960
      %962 = vrot.lane.b32.xlu0 %v856, 90
      %v963 = vpop.permute.xlu0 %962
      %964 = vrot.lane.b32.xlu0 %v857, 90
      %v965 = vpop.permute.xlu0 %964
      %966 = vrot.lane.b32.xlu0 %v858, 90
      %v967 = vpop.permute.xlu0 %966
      %968 = vrot.lane.b32.xlu0 %v859, 90
      %v969 = vpop.permute.xlu0 %968
      %970 = vrot.lane.b32.xlu0 %v860, 90
      %v971 = vpop.permute.xlu0 %970
      %972 = vrot.lane.b32.xlu0 %v861, 90
      %v973 = vpop.permute.xlu0 %972
      %974 = vrot.lane.b32.xlu0 %v862, 90
      %v975 = vpop.permute.xlu0 %974
      %976 = vrot.lane.b32.xlu0 %v863, 90
      %v977 = vpop.permute.xlu0 %976
      %978 = vrot.lane.b32.xlu0 %v864, 90
      %v979 = vpop.permute.xlu0 %978
      %980 = vrot.lane.b32.xlu0 %v865, 90
      %v981 = vpop.permute.xlu0 %980
      %982 = vrot.lane.b32.xlu0 %v866, 90
      %v983 = vpop.permute.xlu0 %982
      %984 = vrot.lane.b32.xlu0 %v867, 90
      %v985 = vpop.permute.xlu0 %984
      %986 = vrot.lane.b32.xlu0 %v868, 90
      %v987 = vpop.permute.xlu0 %986
      %vm988 = vcmask 736256
      %v989 = vsel %vm988, %v917, %v919
      %v990 = vsel %vm988, %v919, %v921
      %v991 = vsel %vm988, %v921, %v923
      %v992 = vsel %vm988, %v925, %v927
      %v993 = vsel %vm988, %v927, %v929
      %v994 = vsel %vm988, %v929, %v931
      %v995 = vsel %vm988, %v933, %v935
      %v996 = vsel %vm988, %v935, %v937
      %v997 = vsel %vm988, %v937, %v939
      %v998 = vsel %vm988, %v941, %v943
      %v999 = vsel %vm988, %v943, %v945
      %v1000 = vsel %vm988, %v945, %v947
      %v1001 = vsel %vm988, %v949, %v951
      %v1002 = vsel %vm988, %v951, %v953
      %v1003 = vsel %vm988, %v953, %v955
      %v1004 = vsel %vm988, %v957, %v959
      %v1005 = vsel %vm988, %v959, %v961
      %v1006 = vsel %vm988, %v961, %v963
      %v1007 = vsel %vm988, %v965, %v967
      %v1008 = vsel %vm988, %v967, %v969
      %v1009 = vsel %vm988, %v969, %v971
      %v1010 = vsel %vm988, %v973, %v975
      %v1011 = vsel %vm988, %v975, %v977
      %v1012 = vsel %vm988, %v977, %v979
      %v1013 = vsel %vm988, %v981, %v983
      %v1014 = vsel %vm988, %v983, %v985
      %v1015 = vsel %vm988, %v985, %v987
      %vm1043 = vcmask 130048
      %v1045 = vsel %vm1043, %v878, 0
      %1047 = vmatprep.subr.bf16.mxu0 %v990
      %1048 = vmatpush1.bf16.msra.mxu0 %v989
      %1049 = vmatprep.subr.bf16.mxu0 %v993
      %1050 = vmatpush1.bf16.msra.mxu0 %v992
      %1051 = vmatprep.subr.bf16.mxu0 %v996
      %1052 = vmatpush1.bf16.msra.mxu0 %v995
      %1053 = vmatprep.subr.bf16.mxu0 %v999
      %1054 = vmatpush1.bf16.msra.mxu0 %v998
      %1055 = vmatprep.subr.bf16.mxu0 %v1002
      %1056 = vmatpush1.bf16.msra.mxu0 %v1001
      %1057 = vmatprep.subr.bf16.mxu0 %v1005
      %1058 = vmatpush1.bf16.msra.mxu0 %v1004
      %1059 = vmatprep.subr.bf16.mxu0 %v1008
      %1060 = vmatpush1.bf16.msra.mxu0 %v1007
      %1061 = vmatprep.subr.bf16.mxu0 %v1011
      %1062 = vmatpush1.bf16.msra.mxu0 %v1010
      %1063 = vmatprep.subr.bf16.mxu0 %v1014
      %1064 = vmatpush1.bf16.msra.mxu0 %v1013
      %1065 = vmatprep.subr.bf16.mxu0 0
      %1066 = vmatpush1.bf16.msra.mxu0 0
      %1067 = vmatprep.subr.bf16.mxu0 0
      %1068 = vmatpush1.bf16.msra.mxu0 0
      %1069 = vmatprep.subr.bf16.mxu0 0
      %1070 = vmatpush1.bf16.msra.mxu0 0
      %1071 = vmatprep.subr.bf16.mxu0 0
      %1072 = vmatpush1.bf16.msra.mxu0 0
      %1073 = vmatprep.subr.bf16.mxu0 0
      %1074 = vmatpush1.bf16.msra.mxu0 0
      %1075 = vmatprep.subr.bf16.mxu0 0
      %1076 = vmatpush1.bf16.msra.mxu0 0
      %1077 = vmatprep.subr.bf16.mxu0 0
      %1078 = vmatpush1.bf16.msra.mxu0 0
      %1079 = vmatprep.mubr.bf16.mxu0 %v1045
      %1080 = vmatmul.mubr.bf16.gmra.mrb[0].mxu0 %v877
      %v1081 = vpop.f32.mrb[0].mxu0
      %v1082 = vadd.f32 0.0, %v1081
      %v1083 = vpop.f32.mrb[0].mxu0
      %v1084 = vadd.f32 0.0, %v1083
      %v1085 = vpop.f32.mrb[0].mxu0
      %v1086 = vadd.f32 0.0, %v1085
      %v1087 = vpop.f32.mrb[0].mxu0
      %v1088 = vadd.f32 0.0, %v1087
      %1089 = vdwg.mxu0
      %1090 = vmatprep.subr.bf16.mxu0 0
      %1091 = vmatpush1.bf16.msra.mxu0 %v991
      %1092 = vmatprep.subr.bf16.mxu0 0
      %1093 = vmatpush1.bf16.msra.mxu0 %v994
      %1094 = vmatprep.subr.bf16.mxu0 0
      %1095 = vmatpush1.bf16.msra.mxu0 %v997
      %1096 = vmatprep.subr.bf16.mxu0 0
      %1097 = vmatpush1.bf16.msra.mxu0 %v1000
      %1098 = vmatprep.subr.bf16.mxu0 0
      %1099 = vmatpush1.bf16.msra.mxu0 %v1003
      %1100 = vmatprep.subr.bf16.mxu0 0
      %1101 = vmatpush1.bf16.msra.mxu0 %v1006
      %1102 = vmatprep.subr.bf16.mxu0 0
      %1103 = vmatpush1.bf16.msra.mxu0 %v1009
      %1104 = vmatprep.subr.bf16.mxu0 0
      %1105 = vmatpush1.bf16.msra.mxu0 %v1012
      %1106 = vmatprep.subr.bf16.mxu0 0
      %1107 = vmatpush1.bf16.msra.mxu0 %v1015
      %1108 = vmatprep.subr.bf16.mxu0 0
      %1109 = vmatpush1.bf16.msra.mxu0 0
      %1110 = vmatprep.subr.bf16.mxu0 0
      %1111 = vmatpush1.bf16.msra.mxu0 0
      %1112 = vmatprep.subr.bf16.mxu0 0
      %1113 = vmatpush1.bf16.msra.mxu0 0
      %1114 = vmatprep.subr.bf16.mxu0 0
      %1115 = vmatpush1.bf16.msra.mxu0 0
      %1116 = vmatprep.subr.bf16.mxu0 0
      %1117 = vmatpush1.bf16.msra.mxu0 0
      %1118 = vmatprep.subr.bf16.mxu0 0
      %1119 = vmatpush1.bf16.msra.mxu0 0
      %1120 = vmatprep.subr.bf16.mxu0 0
      %1121 = vmatpush1.bf16.msra.mxu0 0
      %1122 = vmatprep.mubr.bf16.mxu0 %v1045
      %1123 = vmatmul.mubr.bf16.gmra.mrb[0].mxu0 %v877
      %v1124 = vpop.f32.mrb[0].mxu0
      %v1125 = vadd.f32 0.0, %v1124
      %v1126 = vpop.f32.mrb[0].mxu0
      %v1127 = vpop.f32.mrb[0].mxu0
      %v1128 = vadd.f32 0.0, %v1127
      %v1129 = vpop.f32.mrb[0].mxu0
      %1130 = vdwg.mxu0
      %v1131 = vld [vmem:[%s401] sm:$0xff]
      %v1132 = vld [vmem:[%s401 + $0x8] sm:$0xff]
      %v1133 = vld [vmem:[%s401 + $0x10] sm:$0xff]
      %v1134 = vld [vmem:[%s401 + $0x18] sm:$0xff]
      %v1135 = vld [vmem:[%s401 + $0x20] sm:$0xff]
      %v1136 = vld [vmem:[%s401 + $0x28] sm:$0xff]
      %v1137 = vld [vmem:[%s5] sm:$0xf]
      %v1138 = vld [vmem:[%s5 + $0x4] sm:$0xf]
      %v1141 = vunpack.c.l.b16 %v1137
      %v1142 = vunpack.c.l.b16 %v1138
      %v1143 = vpack.c.b16 %v1142, %v1141
      %v1150 = vunpack.c.l.b16 %v1131
      %v1151 = vunpack.c.h.b16 %v1131
      %v1152 = vunpack.c.l.b16 %v1132
      %v1153 = vunpack.c.h.b16 %v1132
      %v1154 = vunpack.c.l.b16 %v1133
      %v1155 = vunpack.c.h.b16 %v1133
      %v1156 = vunpack.c.l.b16 %v1134
      %v1157 = vunpack.c.h.b16 %v1134
      %v1158 = vunpack.c.l.b16 %v1135
      %v1159 = vunpack.c.h.b16 %v1135
      %v1160 = vunpack.c.l.b16 %v1136
      %v1161 = vunpack.c.h.b16 %v1136
      %v1162 = vpack.c.b16 %v1154, %v1150
      %v1163 = vpack.c.b16 %v1155, %v1151
      %v1164 = vpack.c.b16 %v1156, %v1152
      %v1165 = vpack.c.b16 %v1157, %v1153
      %v1166 = vpack.c.b16 %v1158, %v1158
      %v1167 = vpack.c.b16 %v1159, %v1159
      %v1168 = vpack.c.b16 %v1160, %v1160
      %v1169 = vpack.c.b16 %v1161, %v1161
      %1170 = vrot.lane.b32.xlu0 %v1162, 69
      %v1171 = vpop.permute.xlu0 %1170
      %1172 = vrot.lane.b32.xlu0 %v1163, 69
      %v1173 = vpop.permute.xlu0 %1172
      %1174 = vrot.lane.b32.xlu0 %v1164, 69
      %v1175 = vpop.permute.xlu0 %1174
      %1176 = vrot.lane.b32.xlu0 %v1165, 69
      %v1177 = vpop.permute.xlu0 %1176
      %1178 = vrot.lane.b32.xlu0 %v1166, 69
      %v1179 = vpop.permute.xlu0 %1178
      %1180 = vrot.lane.b32.xlu0 %v1167, 69
      %v1181 = vpop.permute.xlu0 %1180
      %1182 = vrot.lane.b32.xlu0 %v1168, 69
      %v1183 = vpop.permute.xlu0 %1182
      %1184 = vrot.lane.b32.xlu0 %v1169, 69
      %v1185 = vpop.permute.xlu0 %1184
      %vm1186 = vcmask 564224
      %v1187 = vsel %vm1186, %v1171, %v1173
      %v1188 = vsel %vm1186, %v1173, %v1175
      %v1189 = vsel %vm1186, %v1175, %v1177
      %v1190 = vsel %vm1186, %v1179, %v1181
      %v1191 = vsel %vm1186, %v1181, %v1183
      %v1192 = vsel %vm1186, %v1183, %v1185
      %vm1196 = vcmask 195584
      %v1198 = vsel %vm1196, %v1143, 0
      %vm1200 = vcmask 1043456
      %v1202 = vsel %vm1200, %v1190, 0
      %v1205 = vsel %vm1200, %v1191, 0
      %v1208 = vsel %vm1200, %v1192, 0
      %1210 = vmatprep.subr.bf16.mxu0 %v1188
      %1211 = vmatpush1.bf16.msra.mxu0 %v1187
      %1212 = vmatprep.subr.bf16.mxu0 %v1205
      %1213 = vmatpush1.bf16.msra.mxu0 %v1202
      %1214 = vmatprep.subr.bf16.mxu0 0
      %1215 = vmatpush1.bf16.msra.mxu0 0
      %1216 = vmatprep.subr.bf16.mxu0 0
      %1217 = vmatpush1.bf16.msra.mxu0 0
      %1218 = vmatprep.subr.bf16.mxu0 0
      %1219 = vmatpush1.bf16.msra.mxu0 0
      %1220 = vmatprep.subr.bf16.mxu0 0
      %1221 = vmatpush1.bf16.msra.mxu0 0
      %1222 = vmatprep.subr.bf16.mxu0 0
      %1223 = vmatpush1.bf16.msra.mxu0 0
      %1224 = vmatprep.subr.bf16.mxu0 0
      %1225 = vmatpush1.bf16.msra.mxu0 0
      %1226 = vmatprep.subr.bf16.mxu0 0
      %1227 = vmatpush1.bf16.msra.mxu0 0
      %1228 = vmatprep.subr.bf16.mxu0 0
      %1229 = vmatpush1.bf16.msra.mxu0 0
      %1230 = vmatprep.subr.bf16.mxu0 0
      %1231 = vmatpush1.bf16.msra.mxu0 0
      %1232 = vmatprep.subr.bf16.mxu0 0
      %1233 = vmatpush1.bf16.msra.mxu0 0
      %1234 = vmatprep.subr.bf16.mxu0 0
      %1235 = vmatpush1.bf16.msra.mxu0 0
      %1236 = vmatprep.subr.bf16.mxu0 0
      %1237 = vmatpush1.bf16.msra.mxu0 0
      %1238 = vmatprep.subr.bf16.mxu0 0
      %1239 = vmatpush1.bf16.msra.mxu0 0
      %1240 = vmatprep.subr.bf16.mxu0 0
      %1241 = vmatpush1.bf16.msra.mxu0 0
      %1242 = vmatprep.mubr.bf16.mxu0 0
      %1243 = vmatmul.mubr.bf16.gmra.mrb[0].mxu0 %v1198
      %v1244 = vpop.f32.mrb[0].mxu0
      %v1245 = vadd.f32 0.0, %v1244
      %v1246 = vpop.f32.mrb[0].mxu0
      %v1247 = vadd.f32 0.0, %v1246
      %v1248 = vpop.f32.mrb[0].mxu0
      %v1249 = vadd.f32 0.0, %v1248
      %v1250 = vpop.f32.mrb[0].mxu0
      %v1251 = vadd.f32 0.0, %v1250
      %1252 = vdwg.mxu0
      %1253 = vmatprep.subr.bf16.mxu0 0
      %1254 = vmatpush1.bf16.msra.mxu0 %v1189
      %1255 = vmatprep.subr.bf16.mxu0 0
      %1256 = vmatpush1.bf16.msra.mxu0 %v1208
      %1257 = vmatprep.subr.bf16.mxu0 0
      %1258 = vmatpush1.bf16.msra.mxu0 0
      %1259 = vmatprep.subr.bf16.mxu0 0
      %1260 = vmatpush1.bf16.msra.mxu0 0
      %1261 = vmatprep.subr.bf16.mxu0 0
      %1262 = vmatpush1.bf16.msra.mxu0 0
      %1263 = vmatprep.subr.bf16.mxu0 0
      %1264 = vmatpush1.bf16.msra.mxu0 0
      %1265 = vmatprep.subr.bf16.mxu0 0
      %1266 = vmatpush1.bf16.msra.mxu0 0
      %1267 = vmatprep.subr.bf16.mxu0 0
      %1268 = vmatpush1.bf16.msra.mxu0 0
      %1269 = vmatprep.subr.bf16.mxu0 0
      %1270 = vmatpush1.bf16.msra.mxu0 0
      %1271 = vmatprep.subr.bf16.mxu0 0
      %1272 = vmatpush1.bf16.msra.mxu0 0
      %1273 = vmatprep.subr.bf16.mxu0 0
      %1274 = vmatpush1.bf16.msra.mxu0 0
      %1275 = vmatprep.subr.bf16.mxu0 0
      %1276 = vmatpush1.bf16.msra.mxu0 0
      %1277 = vmatprep.subr.bf16.mxu0 0
      %1278 = vmatpush1.bf16.msra.mxu0 0
      %1279 = vmatprep.subr.bf16.mxu0 0
      %1280 = vmatpush1.bf16.msra.mxu0 0
      %1281 = vmatprep.subr.bf16.mxu0 0
      %1282 = vmatpush1.bf16.msra.mxu0 0
      %1283 = vmatprep.subr.bf16.mxu0 0
      %1284 = vmatpush1.bf16.msra.mxu0 0
      %1285 = vmatprep.mubr.bf16.mxu0 0
      %1286 = vmatmul.mubr.bf16.gmra.mrb[0].mxu0 %v1198
      %v1287 = vpop.f32.mrb[0].mxu0
      %v1288 = vadd.f32 0.0, %v1287
      %v1289 = vpop.f32.mrb[0].mxu0
      %v1290 = vpop.f32.mrb[0].mxu0
      %v1291 = vadd.f32 0.0, %v1290
      %v1292 = vpop.f32.mrb[0].mxu0
      %1293 = vdwg.mxu0
      %v1294 = vld [vmem:[%s7] sm:$0xff]
      %v1295 = vld [vmem:[%s7 + $0x8] sm:$0xff]
      %v1296 = vld [vmem:[%s7 + $0x10] sm:$0xff]
      %v1297 = vld [vmem:[%s7 + $0x18] sm:$0xff]
      %1299 = vset.pattern.permute.xlu0 0
      %1300 = vperm.xlu0 %1299, %v1294
      %v1301 = vpop.permute.xlu0 %1300
      %1304 = vset.pattern.permute.xlu0 0
      %1305 = vperm.xlu0 %1304, %v1295
      %v1306 = vpop.permute.xlu0 %1305
      %1309 = vset.pattern.permute.xlu0 0
      %1310 = vperm.xlu0 %1309, %v1296
      %v1311 = vpop.permute.xlu0 %1310
      %1314 = vset.pattern.permute.xlu0 0
      %1315 = vperm.xlu0 %1314, %v1297
      %v1316 = vpop.permute.xlu0 %1315
      %v1318 = vadd.f32 %v1082, %v1301
      %v1319 = vadd.f32 %v1084, %v1301
      %v1320 = vadd.f32 %v1125, %v1301
      %v1321 = vadd.f32 %v1086, %v1306
      %v1322 = vadd.f32 %v1088, %v1306
      %v1323 = vadd.f32 %v1128, %v1306
      %v1324 = vadd.f32 %v1245, %v1311
      %v1325 = vadd.f32 %v1247, %v1311
      %v1326 = vadd.f32 %v1288, %v1311
      %v1327 = vadd.f32 %v1249, %v1316
      %v1328 = vadd.f32 %v1251, %v1316
      %v1329 = vadd.f32 %v1291, %v1316
      %vm1330 = vcmp.ge.f32.partialorder %v1318, 0.0
      %vm1331 = vcmp.ge.f32.partialorder %v1319, 0.0
      %vm1332 = vcmp.ge.f32.partialorder %v1320, 0.0
      %vm1333 = vcmp.ge.f32.partialorder %v1321, 0.0
      %vm1334 = vcmp.ge.f32.partialorder %v1322, 0.0
      %vm1335 = vcmp.ge.f32.partialorder %v1323, 0.0
      %vm1336 = vcmp.ge.f32.partialorder %v1324, 0.0
      %vm1337 = vcmp.ge.f32.partialorder %v1325, 0.0
      %vm1338 = vcmp.ge.f32.partialorder %v1326, 0.0
      %vm1339 = vcmp.ge.f32.partialorder %v1327, 0.0
      %vm1340 = vcmp.ge.f32.partialorder %v1328, 0.0
      %vm1341 = vcmp.ge.f32.partialorder %v1329, 0.0
      %v1342 = vld [vmem:[%s8] sm:$0xff]
      %v1343 = vld [vmem:[%s8 + $0x8] sm:$0xff]
      %v1344 = vld [vmem:[%s8 + $0x10] sm:$0xff]
      %v1345 = vld [vmem:[%s8 + $0x18] sm:$0xff]
      %1347 = vset.pattern.permute.xlu0 0
      %1348 = vperm.xlu0 %1347, %v1342
      %v1349 = vpop.permute.xlu0 %1348
      %1352 = vset.pattern.permute.xlu0 0
      %1353 = vperm.xlu0 %1352, %v1343
      %v1354 = vpop.permute.xlu0 %1353
      %1357 = vset.pattern.permute.xlu0 0
      %1358 = vperm.xlu0 %1357, %v1344
      %v1359 = vpop.permute.xlu0 %1358
      %1362 = vset.pattern.permute.xlu0 0
      %1363 = vperm.xlu0 %1362, %v1345
      %v1364 = vpop.permute.xlu0 %1363
      %v1366 = vmul.f32 %v1349, %v1318
      %v1367 = vmul.f32 %v1349, %v1319
      %v1368 = vmul.f32 %v1349, %v1320
      %v1369 = vmul.f32 %v1354, %v1321
      %v1370 = vmul.f32 %v1354, %v1322
      %v1371 = vmul.f32 %v1354, %v1323
      %v1372 = vmul.f32 %v1359, %v1324
      %v1373 = vmul.f32 %v1359, %v1325
      %v1374 = vmul.f32 %v1359, %v1326
      %v1375 = vmul.f32 %v1364, %v1327
      %v1376 = vmul.f32 %v1364, %v1328
      %v1377 = vmul.f32 %v1364, %v1329
      %v1378 = vsel %vm1330, %v1318, %v1366
      %v1379 = vsel %vm1331, %v1319, %v1367
      %v1380 = vsel %vm1332, %v1320, %v1368
      %v1381 = vsel %vm1333, %v1321, %v1369
      %v1382 = vsel %vm1334, %v1322, %v1370
      %v1383 = vsel %vm1335, %v1323, %v1371
      %v1384 = vsel %vm1336, %v1324, %v1372
      %v1385 = vsel %vm1337, %v1325, %v1373
      %v1386 = vsel %vm1338, %v1326, %v1374
      %v1387 = vsel %vm1339, %v1327, %v1375
      %v1388 = vsel %vm1340, %v1328, %v1376
      %v1389 = vsel %vm1341, %v1329, %v1377
      %v1390 = vld [vmem:[%s2] sm:$0x7]
      %v1392 = vlaneseq
      %v1393 = vshrl.u32 %v1392, 7
      %v1394 = vsub.s32 0, %v1393
      %v1395 = vrot.slane %v1390, %v1394
      %v1396 = vlaneseq
      %v1397 = vshrl.u32 %v1396, 7
      %v1398 = vsub.s32 1, %v1397
      %v1399 = vrot.slane %v1390, %v1398
      %v1400 = vlaneseq
      %v1401 = vshrl.u32 %v1400, 7
      %v1402 = vsub.s32 2, %v1401
      %v1403 = vrot.slane %v1390, %v1402
      %v1407 = vmul.f32 %v1378, %v1395
      %v1408 = vmul.f32 %v1379, %v1399
      %v1409 = vmul.f32 %v1380, %v1403
      %v1410 = vmul.f32 %v1381, %v1395
      %v1411 = vmul.f32 %v1382, %v1399
      %v1412 = vmul.f32 %v1383, %v1403
      %v1413 = vmul.f32 %v1384, %v1395
      %v1414 = vmul.f32 %v1385, %v1399
      %v1415 = vmul.f32 %v1386, %v1403
      %v1416 = vmul.f32 %v1387, %v1395
      %v1417 = vmul.f32 %v1388, %v1399
      %v1418 = vmul.f32 %v1389, %v1403
      %1431 = vrot.lane.b32.xlu0 %v1407, 127
      %v1432 = vpop.permute.xlu0 %1431
      %1433 = vrot.lane.b32.xlu0 %v1408, 127
      %v1434 = vpop.permute.xlu0 %1433
      %1435 = vrot.lane.b32.xlu0 %v1409, 127
      %v1436 = vpop.permute.xlu0 %1435
      %1437 = vrot.lane.b32.xlu0 %v1410, 127
      %v1438 = vpop.permute.xlu0 %1437
      %1439 = vrot.lane.b32.xlu0 %v1411, 127
      %v1440 = vpop.permute.xlu0 %1439
      %1441 = vrot.lane.b32.xlu0 %v1412, 127
      %v1442 = vpop.permute.xlu0 %1441
      %1443 = vrot.lane.b32.xlu0 %v1413, 127
      %v1444 = vpop.permute.xlu0 %1443
      %1445 = vrot.lane.b32.xlu0 %v1414, 127
      %v1446 = vpop.permute.xlu0 %1445
      %1447 = vrot.lane.b32.xlu0 %v1415, 127
      %v1448 = vpop.permute.xlu0 %1447
      %1449 = vrot.lane.b32.xlu0 %v1416, 127
      %v1450 = vpop.permute.xlu0 %1449
      %1451 = vrot.lane.b32.xlu0 %v1417, 127
      %v1452 = vpop.permute.xlu0 %1451
      %1453 = vrot.lane.b32.xlu0 %v1418, 127
      %v1454 = vpop.permute.xlu0 %1453
      %v1455 = vsel %vm565, %v1432, %v1434
      %v1456 = vsel %vm565, %v1434, %v1436
      %v1457 = vsel %vm565, %v1438, %v1440
      %v1458 = vsel %vm565, %v1440, %v1442
      %v1459 = vsel %vm565, %v1444, %v1446
      %v1460 = vsel %vm565, %v1446, %v1448
      %v1461 = vsel %vm565, %v1450, %v1452
      %v1462 = vsel %vm565, %v1452, %v1454
      %1475 = vrot.lane.b32.xlu0 %v1407, 126
      %v1476 = vpop.permute.xlu0 %1475
      %1477 = vrot.lane.b32.xlu0 %v1408, 126
      %v1478 = vpop.permute.xlu0 %1477
      %1479 = vrot.lane.b32.xlu0 %v1409, 126
      %v1480 = vpop.permute.xlu0 %1479
      %1481 = vrot.lane.b32.xlu0 %v1410, 126
      %v1482 = vpop.permute.xlu0 %1481
      %1483 = vrot.lane.b32.xlu0 %v1411, 126
      %v1484 = vpop.permute.xlu0 %1483
      %1485 = vrot.lane.b32.xlu0 %v1412, 126
      %v1486 = vpop.permute.xlu0 %1485
      %1487 = vrot.lane.b32.xlu0 %v1413, 126
      %v1488 = vpop.permute.xlu0 %1487
      %1489 = vrot.lane.b32.xlu0 %v1414, 126
      %v1490 = vpop.permute.xlu0 %1489
      %1491 = vrot.lane.b32.xlu0 %v1415, 126
      %v1492 = vpop.permute.xlu0 %1491
      %1493 = vrot.lane.b32.xlu0 %v1416, 126
      %v1494 = vpop.permute.xlu0 %1493
      %1495 = vrot.lane.b32.xlu0 %v1417, 126
      %v1496 = vpop.permute.xlu0 %1495
      %1497 = vrot.lane.b32.xlu0 %v1418, 126
      %v1498 = vpop.permute.xlu0 %1497
      %v1499 = vsel %vm581, %v1476, %v1478
      %v1500 = vsel %vm581, %v1478, %v1480
      %v1501 = vsel %vm581, %v1482, %v1484
      %v1502 = vsel %vm581, %v1484, %v1486
      %v1503 = vsel %vm581, %v1488, %v1490
      %v1504 = vsel %vm581, %v1490, %v1492
      %v1505 = vsel %vm581, %v1494, %v1496
      %v1506 = vsel %vm581, %v1496, %v1498
      %1519 = vrot.lane.b32.xlu0 %v1407, 108
      %v1520 = vpop.permute.xlu0 %1519
      %1521 = vrot.lane.b32.xlu0 %v1408, 108
      %v1522 = vpop.permute.xlu0 %1521
      %1523 = vrot.lane.b32.xlu0 %v1409, 108
      %v1524 = vpop.permute.xlu0 %1523
      %1525 = vrot.lane.b32.xlu0 %v1410, 108
      %v1526 = vpop.permute.xlu0 %1525
      %1527 = vrot.lane.b32.xlu0 %v1411, 108
      %v1528 = vpop.permute.xlu0 %1527
      %1529 = vrot.lane.b32.xlu0 %v1412, 108
      %v1530 = vpop.permute.xlu0 %1529
      %1531 = vrot.lane.b32.xlu0 %v1413, 108
      %v1532 = vpop.permute.xlu0 %1531
      %1533 = vrot.lane.b32.xlu0 %v1414, 108
      %v1534 = vpop.permute.xlu0 %1533
      %1535 = vrot.lane.b32.xlu0 %v1415, 108
      %v1536 = vpop.permute.xlu0 %1535
      %1537 = vrot.lane.b32.xlu0 %v1416, 108
      %v1538 = vpop.permute.xlu0 %1537
      %1539 = vrot.lane.b32.xlu0 %v1417, 108
      %v1540 = vpop.permute.xlu0 %1539
      %1541 = vrot.lane.b32.xlu0 %v1418, 108
      %v1542 = vpop.permute.xlu0 %1541
      %v1543 = vsel %vm597, %v1520, %v1522
      %v1544 = vsel %vm597, %v1522, %v1524
      %v1545 = vsel %vm597, %v1526, %v1528
      %v1546 = vsel %vm597, %v1528, %v1530
      %v1547 = vsel %vm597, %v1532, %v1534
      %v1548 = vsel %vm597, %v1534, %v1536
      %v1549 = vsel %vm597, %v1538, %v1540
      %v1550 = vsel %vm597, %v1540, %v1542
      %1563 = vrot.lane.b32.xlu0 %v1407, 107
      %v1564 = vpop.permute.xlu0 %1563
      %1565 = vrot.lane.b32.xlu0 %v1408, 107
      %v1566 = vpop.permute.xlu0 %1565
      %1567 = vrot.lane.b32.xlu0 %v1409, 107
      %v1568 = vpop.permute.xlu0 %1567
      %1569 = vrot.lane.b32.xlu0 %v1410, 107
      %v1570 = vpop.permute.xlu0 %1569
      %1571 = vrot.lane.b32.xlu0 %v1411, 107
      %v1572 = vpop.permute.xlu0 %1571
      %1573 = vrot.lane.b32.xlu0 %v1412, 107
      %v1574 = vpop.permute.xlu0 %1573
      %1575 = vrot.lane.b32.xlu0 %v1413, 107
      %v1576 = vpop.permute.xlu0 %1575
      %1577 = vrot.lane.b32.xlu0 %v1414, 107
      %v1578 = vpop.permute.xlu0 %1577
      %1579 = vrot.lane.b32.xlu0 %v1415, 107
      %v1580 = vpop.permute.xlu0 %1579
      %1581 = vrot.lane.b32.xlu0 %v1416, 107
      %v1582 = vpop.permute.xlu0 %1581
      %1583 = vrot.lane.b32.xlu0 %v1417, 107
      %v1584 = vpop.permute.xlu0 %1583
      %1585 = vrot.lane.b32.xlu0 %v1418, 107
      %v1586 = vpop.permute.xlu0 %1585
      %v1587 = vsel %vm613, %v1564, %v1566
      %v1588 = vsel %vm613, %v1566, %v1568
      %v1589 = vsel %vm613, %v1570, %v1572
      %v1590 = vsel %vm613, %v1572, %v1574
      %v1591 = vsel %vm613, %v1576, %v1578
      %v1592 = vsel %vm613, %v1578, %v1580
      %v1593 = vsel %vm613, %v1582, %v1584
      %v1594 = vsel %vm613, %v1584, %v1586
      %1607 = vrot.lane.b32.xlu0 %v1407, 106
      %v1608 = vpop.permute.xlu0 %1607
      %1609 = vrot.lane.b32.xlu0 %v1408, 106
      %v1610 = vpop.permute.xlu0 %1609
      %1611 = vrot.lane.b32.xlu0 %v1409, 106
      %v1612 = vpop.permute.xlu0 %1611
      %1613 = vrot.lane.b32.xlu0 %v1410, 106
      %v1614 = vpop.permute.xlu0 %1613
      %1615 = vrot.lane.b32.xlu0 %v1411, 106
      %v1616 = vpop.permute.xlu0 %1615
      %1617 = vrot.lane.b32.xlu0 %v1412, 106
      %v1618 = vpop.permute.xlu0 %1617
      %1619 = vrot.lane.b32.xlu0 %v1413, 106
      %v1620 = vpop.permute.xlu0 %1619
      %1621 = vrot.lane.b32.xlu0 %v1414, 106
      %v1622 = vpop.permute.xlu0 %1621
      %1623 = vrot.lane.b32.xlu0 %v1415, 106
      %v1624 = vpop.permute.xlu0 %1623
      %1625 = vrot.lane.b32.xlu0 %v1416, 106
      %v1626 = vpop.permute.xlu0 %1625
      %1627 = vrot.lane.b32.xlu0 %v1417, 106
      %v1628 = vpop.permute.xlu0 %1627
      %1629 = vrot.lane.b32.xlu0 %v1418, 106
      %v1630 = vpop.permute.xlu0 %1629
      %v1631 = vsel %vm629, %v1608, %v1610
      %v1632 = vsel %vm629, %v1610, %v1612
      %v1633 = vsel %vm629, %v1614, %v1616
      %v1634 = vsel %vm629, %v1616, %v1618
      %v1635 = vsel %vm629, %v1620, %v1622
      %v1636 = vsel %vm629, %v1622, %v1624
      %v1637 = vsel %vm629, %v1626, %v1628
      %v1638 = vsel %vm629, %v1628, %v1630
      %1651 = vrot.lane.b32.xlu0 %v1407, 88
      %v1652 = vpop.permute.xlu0 %1651
      %1653 = vrot.lane.b32.xlu0 %v1408, 88
      %v1654 = vpop.permute.xlu0 %1653
      %1655 = vrot.lane.b32.xlu0 %v1409, 88
      %v1656 = vpop.permute.xlu0 %1655
      %1657 = vrot.lane.b32.xlu0 %v1410, 88
      %v1658 = vpop.permute.xlu0 %1657
      %1659 = vrot.lane.b32.xlu0 %v1411, 88
      %v1660 = vpop.permute.xlu0 %1659
      %1661 = vrot.lane.b32.xlu0 %v1412, 88
      %v1662 = vpop.permute.xlu0 %1661
      %1663 = vrot.lane.b32.xlu0 %v1413, 88
      %v1664 = vpop.permute.xlu0 %1663
      %1665 = vrot.lane.b32.xlu0 %v1414, 88
      %v1666 = vpop.permute.xlu0 %1665
      %1667 = vrot.lane.b32.xlu0 %v1415, 88
      %v1668 = vpop.permute.xlu0 %1667
      %1669 = vrot.lane.b32.xlu0 %v1416, 88
      %v1670 = vpop.permute.xlu0 %1669
      %1671 = vrot.lane.b32.xlu0 %v1417, 88
      %v1672 = vpop.permute.xlu0 %1671
      %1673 = vrot.lane.b32.xlu0 %v1418, 88
      %v1674 = vpop.permute.xlu0 %1673
      %v1675 = vsel %vm645, %v1652, %v1654
      %v1676 = vsel %vm645, %v1654, %v1656
      %v1677 = vsel %vm645, %v1658, %v1660
      %v1678 = vsel %vm645, %v1660, %v1662
      %v1679 = vsel %vm645, %v1664, %v1666
      %v1680 = vsel %vm645, %v1666, %v1668
      %v1681 = vsel %vm645, %v1670, %v1672
      %v1682 = vsel %vm645, %v1672, %v1674
      %1695 = vrot.lane.b32.xlu0 %v1407, 87
      %v1696 = vpop.permute.xlu0 %1695
      %1697 = vrot.lane.b32.xlu0 %v1408, 87
      %v1698 = vpop.permute.xlu0 %1697
      %1699 = vrot.lane.b32.xlu0 %v1409, 87
      %v1700 = vpop.permute.xlu0 %1699
      %1701 = vrot.lane.b32.xlu0 %v1410, 87
      %v1702 = vpop.permute.xlu0 %1701
      %1703 = vrot.lane.b32.xlu0 %v1411, 87
      %v1704 = vpop.permute.xlu0 %1703
      %1705 = vrot.lane.b32.xlu0 %v1412, 87
      %v1706 = vpop.permute.xlu0 %1705
      %1707 = vrot.lane.b32.xlu0 %v1413, 87
      %v1708 = vpop.permute.xlu0 %1707
      %1709 = vrot.lane.b32.xlu0 %v1414, 87
      %v1710 = vpop.permute.xlu0 %1709
      %1711 = vrot.lane.b32.xlu0 %v1415, 87
      %v1712 = vpop.permute.xlu0 %1711
      %1713 = vrot.lane.b32.xlu0 %v1416, 87
      %v1714 = vpop.permute.xlu0 %1713
      %1715 = vrot.lane.b32.xlu0 %v1417, 87
      %v1716 = vpop.permute.xlu0 %1715
      %1717 = vrot.lane.b32.xlu0 %v1418, 87
      %v1718 = vpop.permute.xlu0 %1717
      %v1719 = vsel %vm661, %v1696, %v1698
      %v1720 = vsel %vm661, %v1698, %v1700
      %v1721 = vsel %vm661, %v1702, %v1704
      %v1722 = vsel %vm661, %v1704, %v1706
      %v1723 = vsel %vm661, %v1708, %v1710
      %v1724 = vsel %vm661, %v1710, %v1712
      %v1725 = vsel %vm661, %v1714, %v1716
      %v1726 = vsel %vm661, %v1716, %v1718
      %1739 = vrot.lane.b32.xlu0 %v1407, 86
      %v1740 = vpop.permute.xlu0 %1739
      %1741 = vrot.lane.b32.xlu0 %v1408, 86
      %v1742 = vpop.permute.xlu0 %1741
      %1743 = vrot.lane.b32.xlu0 %v1409, 86
      %v1744 = vpop.permute.xlu0 %1743
      %1745 = vrot.lane.b32.xlu0 %v1410, 86
      %v1746 = vpop.permute.xlu0 %1745
      %1747 = vrot.lane.b32.xlu0 %v1411, 86
      %v1748 = vpop.permute.xlu0 %1747
      %1749 = vrot.lane.b32.xlu0 %v1412, 86
      %v1750 = vpop.permute.xlu0 %1749
      %1751 = vrot.lane.b32.xlu0 %v1413, 86
      %v1752 = vpop.permute.xlu0 %1751
      %1753 = vrot.lane.b32.xlu0 %v1414, 86
      %v1754 = vpop.permute.xlu0 %1753
      %1755 = vrot.lane.b32.xlu0 %v1415, 86
      %v1756 = vpop.permute.xlu0 %1755
      %1757 = vrot.lane.b32.xlu0 %v1416, 86
      %v1758 = vpop.permute.xlu0 %1757
      %1759 = vrot.lane.b32.xlu0 %v1417, 86
      %v1760 = vpop.permute.xlu0 %1759
      %1761 = vrot.lane.b32.xlu0 %v1418, 86
      %v1762 = vpop.permute.xlu0 %1761
      %v1763 = vsel %vm677, %v1740, %v1742
      %v1764 = vsel %vm677, %v1742, %v1744
      %v1765 = vsel %vm677, %v1746, %v1748
      %v1766 = vsel %vm677, %v1748, %v1750
      %v1767 = vsel %vm677, %v1752, %v1754
      %v1768 = vsel %vm677, %v1754, %v1756
      %v1769 = vsel %vm677, %v1758, %v1760
      %v1770 = vsel %vm677, %v1760, %v1762
      %v1783 = vpack.c.bf16 %v1410, %v1407
      %v1784 = vpack.c.bf16 %v1411, %v1408
      %v1785 = vpack.c.bf16 %v1412, %v1409
      %v1786 = vpack.c.bf16 %v1416, %v1413
      %v1787 = vpack.c.bf16 %v1417, %v1414
      %v1788 = vpack.c.bf16 %v1418, %v1415
      %v1789 = vpack.c.bf16 %v1457, %v1455
      %v1790 = vpack.c.bf16 %v1458, %v1456
      %v1791 = vpack.c.bf16 %v1442, %v1436
      %v1792 = vpack.c.bf16 %v1461, %v1459
      %v1793 = vpack.c.bf16 %v1462, %v1460
      %v1794 = vpack.c.bf16 %v1454, %v1448
      %v1795 = vpack.c.bf16 %v1501, %v1499
      %v1796 = vpack.c.bf16 %v1502, %v1500
      %v1797 = vpack.c.bf16 %v1486, %v1480
      %v1798 = vpack.c.bf16 %v1505, %v1503
      %v1799 = vpack.c.bf16 %v1506, %v1504
      %v1800 = vpack.c.bf16 %v1498, %v1492
      %v1801 = vpack.c.bf16 %v1545, %v1543
      %v1802 = vpack.c.bf16 %v1546, %v1544
      %v1803 = vpack.c.bf16 %v1530, %v1524
      %v1804 = vpack.c.bf16 %v1549, %v1547
      %v1805 = vpack.c.bf16 %v1550, %v1548
      %v1806 = vpack.c.bf16 %v1542, %v1536
      %v1807 = vpack.c.bf16 %v1589, %v1587
      %v1808 = vpack.c.bf16 %v1590, %v1588
      %v1809 = vpack.c.bf16 %v1574, %v1568
      %v1810 = vpack.c.bf16 %v1593, %v1591
      %v1811 = vpack.c.bf16 %v1594, %v1592
      %v1812 = vpack.c.bf16 %v1586, %v1580
      %v1813 = vpack.c.bf16 %v1633, %v1631
      %v1814 = vpack.c.bf16 %v1634, %v1632
      %v1815 = vpack.c.bf16 %v1618, %v1612
      %v1816 = vpack.c.bf16 %v1637, %v1635
      %v1817 = vpack.c.bf16 %v1638, %v1636
      %v1818 = vpack.c.bf16 %v1630, %v1624
      %v1819 = vpack.c.bf16 %v1677, %v1675
      %v1820 = vpack.c.bf16 %v1678, %v1676
      %v1821 = vpack.c.bf16 %v1662, %v1656
      %v1822 = vpack.c.bf16 %v1681, %v1679
      %v1823 = vpack.c.bf16 %v1682, %v1680
      %v1824 = vpack.c.bf16 %v1674, %v1668
      %v1825 = vpack.c.bf16 %v1721, %v1719
      %v1826 = vpack.c.bf16 %v1722, %v1720
      %v1827 = vpack.c.bf16 %v1706, %v1700
      %v1828 = vpack.c.bf16 %v1725, %v1723
      %v1829 = vpack.c.bf16 %v1726, %v1724
      %v1830 = vpack.c.bf16 %v1718, %v1712
      %v1831 = vpack.c.bf16 %v1765, %v1763
      %v1832 = vpack.c.bf16 %v1766, %v1764
      %v1833 = vpack.c.bf16 %v1750, %v1744
      %v1834 = vpack.c.bf16 %v1769, %v1767
      %v1835 = vpack.c.bf16 %v1770, %v1768
      %v1836 = vpack.c.bf16 %v1762, %v1756
      %v1837 = vld [vmem:[%s6] sm:$0xff]
      %v1838 = vld [vmem:[%s6 + $0x8] sm:$0xf]
      %v1839 = vld [vmem:[%s6 + $0xc] sm:$0xff]
      %v1840 = vld [vmem:[%s6 + $0x14] sm:$0xf]
      %v1841 = vld [vmem:[%s9] sm:$0xff]
      %v1842 = vld [vmem:[%s9 + $0x8] sm:$0xff]
      %1844 = vset.pattern.permute.xlu0 0
      %1845 = vperm.xlu0 %1844, %v1841
      %v1846 = vpop.permute.xlu0 %1845
      %1849 = vset.pattern.permute.xlu0 0
      %1850 = vperm.xlu0 %1849, %v1842
      %v1851 = vpop.permute.xlu0 %1850
      %v1857 = vunpack.c.l.b16 %v1837
      %v1858 = vunpack.c.h.b16 %v1837
      %v1859 = vunpack.c.l.b16 %v1838
      %v1860 = vunpack.c.l.b16 %v1839
      %v1861 = vunpack.c.h.b16 %v1839
      %v1862 = vunpack.c.l.b16 %v1840
      %v1863 = vpack.c.b16 %v1860, %v1857
      %v1864 = vpack.c.b16 %v1861, %v1858
      %v1865 = vpack.c.b16 %v1862, %v1859
      %v1869 = vsel %vm463, %v1865, 0
      %1871 = vmatprep.subr.bf16.mxu0 %v1784
      %1872 = vmatpush1.bf16.msra.mxu0 %v1783
      %1873 = vmatprep.subr.bf16.mxu0 %v1787
      %1874 = vmatpush1.bf16.msra.mxu0 %v1786
      %1875 = vmatprep.subr.bf16.mxu0 %v1790
      %1876 = vmatpush1.bf16.msra.mxu0 %v1789
      %1877 = vmatprep.subr.bf16.mxu0 %v1793
      %1878 = vmatpush1.bf16.msra.mxu0 %v1792
      %1879 = vmatprep.subr.bf16.mxu0 %v1796
      %1880 = vmatpush1.bf16.msra.mxu0 %v1795
      %1881 = vmatprep.subr.bf16.mxu0 %v1799
      %1882 = vmatpush1.bf16.msra.mxu0 %v1798
      %1883 = vmatprep.subr.bf16.mxu0 %v1802
      %1884 = vmatpush1.bf16.msra.mxu0 %v1801
      %1885 = vmatprep.subr.bf16.mxu0 %v1805
      %1886 = vmatpush1.bf16.msra.mxu0 %v1804
      %1887 = vmatprep.subr.bf16.mxu0 %v1808
      %1888 = vmatpush1.bf16.msra.mxu0 %v1807
      %1889 = vmatprep.subr.bf16.mxu0 %v1811
      %1890 = vmatpush1.bf16.msra.mxu0 %v1810
      %1891 = vmatprep.subr.bf16.mxu0 %v1814
      %1892 = vmatpush1.bf16.msra.mxu0 %v1813
      %1893 = vmatprep.subr.bf16.mxu0 %v1817
      %1894 = vmatpush1.bf16.msra.mxu0 %v1816
      %1895 = vmatprep.subr.bf16.mxu0 %v1820
      %1896 = vmatpush1.bf16.msra.mxu0 %v1819
      %1897 = vmatprep.subr.bf16.mxu0 %v1823
      %1898 = vmatpush1.bf16.msra.mxu0 %v1822
      %1899 = vmatprep.subr.bf16.mxu0 %v1826
      %1900 = vmatpush1.bf16.msra.mxu0 %v1825
      %1901 = vmatprep.subr.bf16.mxu0 %v1829
      %1902 = vmatpush1.bf16.msra.mxu0 %v1828
      %1903 = vmatprep.mubr.bf16.mxu0 %v1864
      %1904 = vmatmul.mubr.bf16.gmra.mrb[0].mxu0 %v1863
      %v1905 = vpop.f32.mrb[0].mxu0
      %v1906 = vadd.f32 %v1846, %v1905
      %v1907 = vpop.f32.mrb[0].mxu0
      %v1908 = vadd.f32 %v1846, %v1907
      %v1909 = vpop.f32.mrb[0].mxu0
      %v1910 = vadd.f32 %v1851, %v1909
      %v1911 = vpop.f32.mrb[0].mxu0
      %v1912 = vadd.f32 %v1851, %v1911
      %1913 = vdwg.mxu0
      %1914 = vmatprep.subr.bf16.mxu0 %v1832
      %1915 = vmatpush1.bf16.msra.mxu0 %v1831
      %1916 = vmatprep.subr.bf16.mxu0 %v1835
      %1917 = vmatpush1.bf16.msra.mxu0 %v1834
      %1918 = vmatprep.subr.bf16.mxu0 0
      %1919 = vmatpush1.bf16.msra.mxu0 0
      %1920 = vmatprep.subr.bf16.mxu0 0
      %1921 = vmatpush1.bf16.msra.mxu0 0
      %1922 = vmatprep.subr.bf16.mxu0 0
      %1923 = vmatpush1.bf16.msra.mxu0 0
      %1924 = vmatprep.subr.bf16.mxu0 0
      %1925 = vmatpush1.bf16.msra.mxu0 0
      %1926 = vmatprep.subr.bf16.mxu0 0
      %1927 = vmatpush1.bf16.msra.mxu0 0
      %1928 = vmatprep.subr.bf16.mxu0 0
      %1929 = vmatpush1.bf16.msra.mxu0 0
      %1930 = vmatprep.subr.bf16.mxu0 0
      %1931 = vmatpush1.bf16.msra.mxu0 0
      %1932 = vmatprep.subr.bf16.mxu0 0
      %1933 = vmatpush1.bf16.msra.mxu0 0
      %1934 = vmatprep.subr.bf16.mxu0 0
      %1935 = vmatpush1.bf16.msra.mxu0 0
      %1936 = vmatprep.subr.bf16.mxu0 0
      %1937 = vmatpush1.bf16.msra.mxu0 0
      %1938 = vmatprep.subr.bf16.mxu0 0
      %1939 = vmatpush1.bf16.msra.mxu0 0
      %1940 = vmatprep.subr.bf16.mxu0 0
      %1941 = vmatpush1.bf16.msra.mxu0 0
      %1942 = vmatprep.subr.bf16.mxu0 0
      %1943 = vmatpush1.bf16.msra.mxu0 0
      %1944 = vmatprep.subr.bf16.mxu0 0
      %1945 = vmatpush1.bf16.msra.mxu0 0
      %1946 = vmatprep.mubr.bf16.mxu0 0
      %1947 = vmatmul.mubr.bf16.gmra.mrb[0].mxu0 %v1869
      %v1948 = vpop.f32.mrb[0].mxu0
      %v1949 = vadd.f32 %v1906, %v1948
      %v1950 = vpop.f32.mrb[0].mxu0
      %v1951 = vadd.f32 %v1908, %v1950
      %v1952 = vpop.f32.mrb[0].mxu0
      %v1953 = vadd.f32 %v1910, %v1952
      %v1954 = vpop.f32.mrb[0].mxu0
      %v1955 = vadd.f32 %v1912, %v1954
      %1956 = vdwg.mxu0
      %1957 = vmatprep.subr.bf16.mxu0 0
      %1958 = vmatpush1.bf16.msra.mxu0 %v1785
      %1959 = vmatprep.subr.bf16.mxu0 0
      %1960 = vmatpush1.bf16.msra.mxu0 %v1788
      %1961 = vmatprep.subr.bf16.mxu0 0
      %1962 = vmatpush1.bf16.msra.mxu0 %v1791
      %1963 = vmatprep.subr.bf16.mxu0 0
      %1964 = vmatpush1.bf16.msra.mxu0 %v1794
      %1965 = vmatprep.subr.bf16.mxu0 0
      %1966 = vmatpush1.bf16.msra.mxu0 %v1797
      %1967 = vmatprep.subr.bf16.mxu0 0
      %1968 = vmatpush1.bf16.msra.mxu0 %v1800
      %1969 = vmatprep.subr.bf16.mxu0 0
      %1970 = vmatpush1.bf16.msra.mxu0 %v1803
      %1971 = vmatprep.subr.bf16.mxu0 0
      %1972 = vmatpush1.bf16.msra.mxu0 %v1806
      %1973 = vmatprep.subr.bf16.mxu0 0
      %1974 = vmatpush1.bf16.msra.mxu0 %v1809
      %1975 = vmatprep.subr.bf16.mxu0 0
      %1976 = vmatpush1.bf16.msra.mxu0 %v1812
      %1977 = vmatprep.subr.bf16.mxu0 0
      %1978 = vmatpush1.bf16.msra.mxu0 %v1815
      %1979 = vmatprep.subr.bf16.mxu0 0
      %1980 = vmatpush1.bf16.msra.mxu0 %v1818
      %1981 = vmatprep.subr.bf16.mxu0 0
      %1982 = vmatpush1.bf16.msra.mxu0 %v1821
      %1983 = vmatprep.subr.bf16.mxu0 0
      %1984 = vmatpush1.bf16.msra.mxu0 %v1824
      %1985 = vmatprep.subr.bf16.mxu0 0
      %1986 = vmatpush1.bf16.msra.mxu0 %v1827
      %1987 = vmatprep.subr.bf16.mxu0 0
      %1988 = vmatpush1.bf16.msra.mxu0 %v1830
      %1989 = vmatprep.mubr.bf16.mxu0 %v1864
      %1990 = vmatmul.mubr.bf16.gmra.mrb[0].mxu0 %v1863
      %v1991 = vpop.f32.mrb[0].mxu0
      %v1992 = vadd.f32 %v1846, %v1991
      %v1993 = vpop.f32.mrb[0].mxu0
      %v1994 = vpop.f32.mrb[0].mxu0
      %v1995 = vadd.f32 %v1851, %v1994
      %v1996 = vpop.f32.mrb[0].mxu0
      %1997 = vdwg.mxu0
      %1998 = vmatprep.subr.bf16.mxu0 0
      %1999 = vmatpush1.bf16.msra.mxu0 %v1833
      %2000 = vmatprep.subr.bf16.mxu0 0
      %2001 = vmatpush1.bf16.msra.mxu0 %v1836
      %2002 = vmatprep.subr.bf16.mxu0 0
      %2003 = vmatpush1.bf16.msra.mxu0 0
      %2004 = vmatprep.subr.bf16.mxu0 0
      %2005 = vmatpush1.bf16.msra.mxu0 0
      %2006 = vmatprep.subr.bf16.mxu0 0
      %2007 = vmatpush1.bf16.msra.mxu0 0
      %2008 = vmatprep.subr.bf16.mxu0 0
      %2009 = vmatpush1.bf16.msra.mxu0 0
      %2010 = vmatprep.subr.bf16.mxu0 0
      %2011 = vmatpush1.bf16.msra.mxu0 0
      %2012 = vmatprep.subr.bf16.mxu0 0
      %2013 = vmatpush1.bf16.msra.mxu0 0
      %2014 = vmatprep.subr.bf16.mxu0 0
      %2015 = vmatpush1.bf16.msra.mxu0 0
      %2016 = vmatprep.subr.bf16.mxu0 0
      %2017 = vmatpush1.bf16.msra.mxu0 0
      %2018 = vmatprep.subr.bf16.mxu0 0
      %2019 = vmatpush1.bf16.msra.mxu0 0
      %2020 = vmatprep.subr.bf16.mxu0 0
      %2021 = vmatpush1.bf16.msra.mxu0 0
      %2022 = vmatprep.subr.bf16.mxu0 0
      %2023 = vmatpush1.bf16.msra.mxu0 0
      %2024 = vmatprep.subr.bf16.mxu0 0
      %2025 = vmatpush1.bf16.msra.mxu0 0
      %2026 = vmatprep.subr.bf16.mxu0 0
      %2027 = vmatpush1.bf16.msra.mxu0 0
      %2028 = vmatprep.subr.bf16.mxu0 0
      %2029 = vmatpush1.bf16.msra.mxu0 0
      %2030 = vmatprep.mubr.bf16.mxu0 0
      %2031 = vmatmul.mubr.bf16.gmra.mrb[0].mxu0 %v1869
      %v2032 = vpop.f32.mrb[0].mxu0
      %v2033 = vadd.f32 %v1992, %v2032
      %v2034 = vpop.f32.mrb[0].mxu0
      %v2035 = vpop.f32.mrb[0].mxu0
      %v2036 = vadd.f32 %v1995, %v2035
      %v2037 = vpop.f32.mrb[0].mxu0
      %2038 = vdwg.mxu0
      %vm2039 = vcmp.ge.f32.partialorder %v1949, 0.0
      %vm2040 = vcmp.ge.f32.partialorder %v1951, 0.0
      %vm2041 = vcmp.ge.f32.partialorder %v2033, 0.0
      %vm2042 = vcmp.ge.f32.partialorder %v1953, 0.0
      %vm2043 = vcmp.ge.f32.partialorder %v1955, 0.0
      %vm2044 = vcmp.ge.f32.partialorder %v2036, 0.0
      %v2045 = vld [vmem:[%s10] sm:$0xff]
      %v2046 = vld [vmem:[%s10 + $0x8] sm:$0xff]
      %2048 = vset.pattern.permute.xlu0 0
      %2049 = vperm.xlu0 %2048, %v2045
      %v2050 = vpop.permute.xlu0 %2049
      %2053 = vset.pattern.permute.xlu0 0
      %2054 = vperm.xlu0 %2053, %v2046
      %v2055 = vpop.permute.xlu0 %2054
      %v2057 = vmul.f32 %v2050, %v1949
      %v2058 = vmul.f32 %v2050, %v1951
      %v2059 = vmul.f32 %v2050, %v2033
      %v2060 = vmul.f32 %v2055, %v1953
      %v2061 = vmul.f32 %v2055, %v1955
      %v2062 = vmul.f32 %v2055, %v2036
      %v2063 = vsel %vm2039, %v1949, %v2057
      %v2064 = vsel %vm2040, %v1951, %v2058
      %v2065 = vsel %vm2041, %v2033, %v2059
      %v2066 = vsel %vm2042, %v1953, %v2060
      %v2067 = vsel %vm2043, %v1955, %v2061
      %v2068 = vsel %vm2044, %v2036, %v2062
      %2069 = vst [vmem:[%s406] sm:$0xff] %v2063
      %2070 = vst [vmem:[%s406 + $0x8] sm:$0xff] %v2064
      %vm2071 = vcmask 523264
      %2072 = vst.msk [vmem:[%s406 + $0x10] sm:$0xff] %vm2071, %v2065
      %2073 = vst [vmem:[%s406 + $0x18] sm:$0xff] %v2066
      %2074 = vst [vmem:[%s406 + $0x20] sm:$0xff] %v2067
      %2075 = vst.msk [vmem:[%s406 + $0x28] sm:$0xff] %vm2071, %v2068
      %p2076 = scmp.lt.s32.totalorder %s22, 1
      %s2077 = scalar_select %p2076, %s22, 1
      %s2078 = smul.addr %s2077, 6
      %s2079 = smul.addr %s2078, 8
      %s2080 = scalar_lea.vmem %s11, %s2079
      // Predicated region
      $region65: #{conbine_feature_cat_forward.1} parent=63 // pred_check
        %p2081 = pneg %p281
      $region66: #{conbine_feature_cat_forward.1} parent=63 // pred_check_branch
        %2083 = sbr.rel (%p2081) target = $region68
      $region67: #{conbine_feature_cat_forward.1} parent=63 // pred_region
        _
      $region68: #{conbine_feature_cat_forward.1} parent=63 // pred_fallthru
        _
    $region64: #{conbine_feature_cat_forward.1} parent=5 // pred_fallthru
      _
    %p2084 = scmp.le.s32.totalorder 2, %s17
    // Predicated region
    $region69: #{conbine_feature_cat_forward.1} parent=5 // pred_check
      %p2085 = pneg %p2084
    $region70: #{conbine_feature_cat_forward.1} parent=5 // pred_check_branch
      %2087 = sbr.rel (%p2085) target = $region72
    $region71: #{conbine_feature_cat_forward.1} parent=5 // pred_region
      %s2088 = ssub.s32 %s17, 2
      // Predicated region
      $region73: #{conbine_feature_cat_forward.1} parent=71 // pred_check
        %p2089 = pneg %p287
      $region74: #{conbine_feature_cat_forward.1} parent=71 // pred_check_branch
        %2091 = sbr.rel (%p2089) target = $region76
      $region75: #{conbine_feature_cat_forward.1} parent=71 // pred_region
        %p2092 = scmp.lt.s32.totalorder %s23, 1
        %s2093 = scalar_select %p2092, %s23, 1
        %s2094 = smul.addr %s2093, 6
        %s2095 = smul.addr %s2094, 8
        %s2096 = scalar_lea.vmem %s11, %s2095
      $region76: #{conbine_feature_cat_forward.1} parent=71 // pred_fallthru
        _
    $region72: #{conbine_feature_cat_forward.1} parent=5 // pred_fallthru
      _
  $region6: #{conbine_feature_cat_forward.1} parent=0 // loop_footer
    %s21 = sadd.s32 1, %s17
  $region7: #{conbine_feature_cat_forward.1} parent=0 // loop_footer_branch
    %16 = sbr.rel target = $region3
  $region8: #{conbine_feature_cat_forward.1} parent=0 // loop_exit
    _

</llo_original>
